<compile_context>
chip_gen: v7x
topology: tpu7x:2x2x1
jax: 0.10.0
libtpu: 0.0.40
codegen_flags: <defaults>
</compile_context>

<pallas_src>
import functools

import jax
import jax.numpy as jnp
from jax.experimental import pallas as pl
from jax.experimental.pallas import tpu as pltpu


def _round_up(n, m):
    return ((n + m - 1) // m) * m


def _mlp_kernel(x_ref, w0_ref, b0_ref, wh_ref, bh_ref, wl_ref, bl_ref,
                o_ref, h_ref, *, first_resid, last_resid, resident):
    """One (batch_tile, layer) grid step of the fused ResidLinearMLP forward.

    x_ref : (bt, in_p)        f32   input tile (resident across the layer axis)
    w0/b0 : (in_p, hid_p) bf16 / (1, hid_p) f32     first Linear
    wh/bh : resident: (n_steps, hid_p, hid_p) bf16 / (n_steps, 1, hid_p) f32
            streamed: (1, hid_p, hid_p)       bf16 / (1, 1, hid_p)       f32
    wl/bl : (hid_p, out_p) bf16 / (1, out_p) f32    last Linear
    o_ref : (bt, out_dim)     f32   written only on the last layer step
    h_ref : (bt, hid_p)       f32   VMEM scratch holding the running activation
    """
    l = pl.program_id(1)
    n_l = pl.num_programs(1)

    # --- first layer: Linear(in, hidden) (+ residual iff in_dim == hidden_dim) ---
    @pl.when(l == 0)
    def _first():
        x = x_ref[...]
        z = jnp.dot(x.astype(jnp.bfloat16), w0_ref[...],
                    preferred_element_type=jnp.float32) + b0_ref[...]
        if first_resid:
            z = z + x
        h_ref[...] = jnp.maximum(z, 0.0)   # activation = ReLU
        # TODO(synk): activation fixed to ReLU (usual cryodrgn choice); other
        # activation classes would need their own epilogue.

    # --- hidden layer l: ResidLinear(hidden, hidden) + ReLU ----------------------
    h = h_ref[...]
    wh = wh_ref[l] if resident else wh_ref[0]
    bh = bh_ref[l] if resident else bh_ref[0]
    z = jnp.dot(h.astype(jnp.bfloat16), wh,
                preferred_element_type=jnp.float32) + bh
    h_ref[...] = jnp.maximum(z + h, 0.0)

    # --- last layer: Linear(hidden, out) (+ residual iff out_dim == hidden_dim) --
    @pl.when(l == n_l - 1)
    def _last():
        hf = h_ref[...]
        z = jnp.dot(hf.astype(jnp.bfloat16), wl_ref[...],
                    preferred_element_type=jnp.float32) + bl_ref[...]
        if last_resid:
            z = z + hf
        out_cols = o_ref.shape[-1]
        if z.shape[-1] != out_cols:           # unpadded output: masked store,
            z = z[:, :out_cols]               # once per batch tile only
        o_ref[...] = z.astype(o_ref.dtype)


def _default_batch_tile(B):
    if B >= 2048:
        # Large batch: tiles that are multiples of 256, >= 8 tiles total,
        # capped at 1024 rows per tile.
        return max(256, min(1024, (B // (8 * 256)) * 256))
    # Small batch: ~8 tiles, multiple of 8 (f32 sublane minimum).
    return max(8, _round_up(-(-B // 8), 8))


def resid_linear_mlp(x, params, *, in_dim, nlayers, hidden_dim, out_dim,
                     batch_tile=None):
    """ResidLinearMLP forward via pallas_call.

    x: (B, in_dim) f32
    params: w0 (in_dim, hidden) bf16, b0 (1, hidden) f32,
            wh (nlayers, hidden, hidden) bf16, bh (nlayers, 1, hidden) f32,
            wl (hidden, out_dim) bf16, bl (1, out_dim) f32
    """
    B = x.shape[0]
    assert x.shape == (B, in_dim)

    first_resid = (in_dim == hidden_dim)
    last_resid = (out_dim == hidden_dim)

    # Lane-dense padding of the feature dims that feed the MXU (zero padding is
    # exact for this network).  The output slab stays UNPADDED (see out_specs).
    in_p = _round_up(in_dim, 128)
    hid_p = _round_up(hidden_dim, 128)
    out_p = _round_up(out_dim, 128)

    # Batch tiling: >= 8 tiles when possible, even tile count for 2-TC balance.
    if batch_tile is None:
        batch_tile = _default_batch_tile(B)
    assert batch_tile % 8 == 0
    n_tiles = -(-B // batch_tile)
    if n_tiles > 1 and n_tiles % 2:
        n_tiles += 1
    B_p = n_tiles * batch_tile

    # --- pad / stack parameters ------------------------------------------------
    w0 = jnp.pad(params["w0"], ((0, in_p - in_dim), (0, hid_p - hidden_dim)))
    b0 = jnp.pad(params["b0"], ((0, 0), (0, hid_p - hidden_dim)))
    wl = jnp.pad(params["wl"], ((0, hid_p - hidden_dim), (0, out_p - out_dim)))
    bl = jnp.pad(params["bl"], ((0, 0), (0, out_p - out_dim)))

    wh, bh = params["wh"], params["bh"]
    if nlayers == 0:
        # An all-zero ResidLinear + ReLU is the identity on post-ReLU (>=0)
        # activations, so nlayers == 0 is handled with one dummy layer step.
        wh = jnp.zeros((1, hidden_dim, hidden_dim), params["wl"].dtype)
        bh = jnp.zeros((1, 1, hidden_dim), jnp.float32)
    n_steps = max(nlayers, 1)
    wh = jnp.pad(wh, ((0, 0), (0, hid_p - hidden_dim), (0, hid_p - hidden_dim)))
    bh = jnp.pad(bh, ((0, 0), (0, 0), (0, hid_p - hidden_dim)))

    # TODO(synk): x could optionally be fed as bf16 to halve the input DMA for
    # very large in_dim (slightly changes the first-layer residual numerics).
    x_p = jnp.pad(x, ((0, B_p - B), (0, in_p - in_dim)))

    # --- generation-aware VMEM budget & resident-weight decision ----------------
    try:
        vmem_capacity = int(pltpu.get_tpu_info().vmem_capacity_bytes)
    except Exception:
        vmem_capacity = 64 * 1024 * 1024   # conservative: v7x per-TC VMEM
    vmem_cap = int(0.78 * vmem_capacity)   # ~50 MiB on v7x, ~100 MiB on v5e/v6e

    def _vmem_est(use_resident):
        est = (2 * batch_tile * in_p * 4            # x tile (double-buffered)
               + 2 * batch_tile * out_dim * 4       # out tile (double-buffered)
               + in_p * hid_p * 2 + hid_p * 4       # w0 / b0 (Buffered(1))
               + hid_p * out_p * 2 + out_p * 4      # wl / bl (Buffered(1))
               + batch_tile * hid_p * 4)            # h scratch
        if use_resident:
            est += n_steps * hid_p * hid_p * 2 + n_steps * hid_p * 4
        else:
            est += 2 * (hid_p * hid_p * 2 + hid_p * 4)  # one layer, dbl-buffered
        return est

    wh_stack_bytes = n_steps * hid_p * hid_p * 2 + n_steps * hid_p * 4
    resident = (wh_stack_bytes <= int(0.45 * vmem_capacity)
                and _vmem_est(True) <= int(0.70 * vmem_capacity))
    # TODO(synk): on v7x a VMEM_SHARED / core_map variant could hold one resident
    # copy of the stack for both TensorCores; not implemented here.
    vmem_limit = min(vmem_cap, max(int(1.5 * _vmem_est(resident)),
                                   16 * 1024 * 1024))

    # --- honest cost estimate ----------------------------------------------------
    flops = 2 * B_p * (in_p * hid_p + n_steps * hid_p * hid_p + hid_p * out_p)
    w_once = (w0.size + wl.size) * 2 + (b0.size + bl.size) * 4
    wh_bytes = wh.size * 2 + bh.size * 4
    if not resident:
        wh_bytes *= n_tiles                 # streamed: re-fetched per batch tile
    bytes_accessed = B_p * in_p * 4 + B_p * out_dim * 4 + w_once + wh_bytes

    kernel = functools.partial(_mlp_kernel, first_resid=first_resid,
                               last_resid=last_resid, resident=resident)
    grid = (n_tiles, n_steps)

    def _build(use_buffered, limit):
        inv_kw = dict(pipeline_mode=pl.Buffered(1)) if use_buffered else {}
        if resident:
            wh_spec = pl.BlockSpec((n_steps, hid_p, hid_p),
                                   lambda i, l: (0, 0, 0), **inv_kw)
            bh_spec = pl.BlockSpec((n_steps, 1, hid_p),
                                   lambda i, l: (0, 0, 0), **inv_kw)
        else:
            wh_spec = pl.BlockSpec((1, hid_p, hid_p), lambda i, l: (l, 0, 0))
            bh_spec = pl.BlockSpec((1, 1, hid_p), lambda i, l: (l, 0, 0))
        return pl.pallas_call(
            kernel,
            out_shape=jax.ShapeDtypeStruct((B_p, out_dim), jnp.float32),
            grid=grid,
            in_specs=[
                pl.BlockSpec((batch_tile, in_p), lambda i, l: (i, 0)),   # x tile
                pl.BlockSpec((in_p, hid_p), lambda i, l: (0, 0), **inv_kw),  # w0
                pl.BlockSpec((1, hid_p), lambda i, l: (0, 0), **inv_kw),     # b0
                wh_spec,                                                      # wh
                bh_spec,                                                      # bh
                pl.BlockSpec((hid_p, out_p), lambda i, l: (0, 0), **inv_kw),  # wl
                pl.BlockSpec((1, out_p), lambda i, l: (0, 0), **inv_kw),      # bl
            ],
            out_specs=pl.BlockSpec((batch_tile, out_dim), lambda i, l: (i, 0)),
            scratch_shapes=[pltpu.VMEM((batch_tile, hid_p), jnp.float32)],
            compiler_params=pltpu.CompilerParams(
                dimension_semantics=("parallel", "arbitrary"),
                vmem_limit_bytes=int(limit)),
            cost_estimate=pl.CostEstimate(flops=flops, transcendentals=0,
                                          bytes_accessed=bytes_accessed),
        )

    try:
        out_padded = _build(True, vmem_limit)(x_p, w0, b0, wh, bh, wl, bl)
    except Exception:
        # Fallback if this Pallas build rejects pipeline_mode=Buffered(1);
        # grid-invariant blocks then get the default double buffer.
        out_padded = _build(False, vmem_cap)(x_p, w0, b0, wh, bh, wl, bl)

    return out_padded[:B]


def _init_linear(key, d_in, d_out):
    """Mimics torch nn.Linear default init; weights stored bf16, bias f32."""
    kw, kb = jax.random.split(key)
    bound = 1.0 / jnp.sqrt(jnp.float32(d_in))
    w = jax.random.uniform(kw, (d_in, d_out), jnp.float32, -bound, bound)
    b = jax.random.uniform(kb, (1, d_out), jnp.float32, -bound, bound)
    return w.astype(jnp.bfloat16), b


def make_params(key, in_dim, nlayers, hidden_dim, out_dim):
    keys = jax.random.split(key, nlayers + 2)
    w0, b0 = _init_linear(keys[0], in_dim, hidden_dim)
    whs, bhs = [], []
    for l in range(nlayers):
        w, b = _init_linear(keys[1 + l], hidden_dim, hidden_dim)
        whs.append(w)
        bhs.append(b)
    wl, bl = _init_linear(keys[-1], hidden_dim, out_dim)
    if whs:
        wh, bh = jnp.stack(whs, 0), jnp.stack(bhs, 0)
    else:
        wh = jnp.zeros((0, hidden_dim, hidden_dim), jnp.bfloat16)
        bh = jnp.zeros((0, 1, hidden_dim), jnp.float32)
    return {"w0": w0, "b0": b0, "wh": wh, "bh": bh, "wl": wl, "bl": bl}


def reference_forward(x, params, *, in_dim, nlayers, hidden_dim, out_dim):
    """Plain-JAX reference with the same bf16-matmul / f32-epilogue math."""
    def dot(h, w):
        return jnp.dot(h.astype(jnp.bfloat16), w,
                       preferred_element_type=jnp.float32)

    h = x.astype(jnp.float32)
    z = dot(h, params["w0"]) + params["b0"]
    if in_dim == hidden_dim:
        z = z + h
    h = jnp.maximum(z, 0.0)
    for l in range(nlayers):
        z = dot(h, params["wh"][l]) + params["bh"][l] + h
        h = jnp.maximum(z, 0.0)
    z = dot(h, params["wl"]) + params["bl"]
    if out_dim == hidden_dim:
        z = z + h
    return z


if __name__ == "__main__":
    # Small shapes consistent with the module; in_dim == hidden_dim exercises the
    # ResidLinear first layer, out_dim != hidden_dim exercises the plain last
    # layer plus the unpadded-output store.
    B, IN_DIM, NLAYERS, HIDDEN_DIM, OUT_DIM = 256, 32, 2, 32, 16

    key = jax.random.PRNGKey(0)
    kx, kp = jax.random.split(key)
    x = jax.random.normal(kx, (B, IN_DIM), jnp.float32)
    params = make_params(kp, IN_DIM, NLAYERS, HIDDEN_DIM, OUT_DIM)

    out = resid_linear_mlp(
        x, params,
        in_dim=IN_DIM, nlayers=NLAYERS,
        hidden_dim=HIDDEN_DIM, out_dim=OUT_DIM,
    )
    out = jax.block_until_ready(out)

    ref = reference_forward(
        x, params,
        in_dim=IN_DIM, nlayers=NLAYERS,
        hidden_dim=HIDDEN_DIM, out_dim=OUT_DIM,
    )
    assert out.shape == (B, OUT_DIM)
    assert jnp.allclose(out, ref, atol=2e-3, rtol=2e-3), "mismatch vs reference"

    print("KERNEL_OK")
</pallas_src>

<mosaic_0001>
module attributes {stable_mosaic.version = 11 : i64} {
  func.func @_mlp_kernel(%arg0: i32, %arg1: i32, %arg2: memref<32x128xf32, #tpu.memory_space<vmem>>, %arg3: memref<128x128xbf16, #tpu.memory_space<vmem>>, %arg4: memref<1x128xf32, #tpu.memory_space<vmem>>, %arg5: memref<2x128x128xbf16, #tpu.memory_space<vmem>>, %arg6: memref<2x1x128xf32, #tpu.memory_space<vmem>>, %arg7: memref<128x128xbf16, #tpu.memory_space<vmem>>, %arg8: memref<1x128xf32, #tpu.memory_space<vmem>>, %arg9: memref<32x16xf32, #tpu.memory_space<vmem>>, %arg10: memref<32x128xf32, #tpu.memory_space<vmem>>) attributes {dimension_semantics = [#tpu.dimension_semantics<parallel>, #tpu.dimension_semantics<arbitrary>], iteration_bounds = array<i64: 8, 2>, scalar_prefetch = 0 : i64, scratch_operands = 1 : i64, tpu.core_type = #tpu.core_type<tc>, window_params = [{transform_indices = @transform_0, window_bounds = array<i64: 32, 128>}, {pipeline_mode = #tpu.pipeline_mode<synchronous>, transform_indices = @transform_1, window_bounds = array<i64: 128, 128>}, {pipeline_mode = #tpu.pipeline_mode<synchronous>, transform_indices = @transform_2, window_bounds = array<i64: 1, 128>}, {pipeline_mode = #tpu.pipeline_mode<synchronous>, transform_indices = @transform_3, window_bounds = array<i64: 2, 128, 128>}, {pipeline_mode = #tpu.pipeline_mode<synchronous>, transform_indices = @transform_4, window_bounds = array<i64: 2, 1, 128>}, {pipeline_mode = #tpu.pipeline_mode<synchronous>, transform_indices = @transform_5, window_bounds = array<i64: 128, 128>}, {pipeline_mode = #tpu.pipeline_mode<synchronous>, transform_indices = @transform_6, window_bounds = array<i64: 1, 128>}, {transform_indices = @transform_7, window_bounds = array<i64: 32, 16>}]} {
    %c0_i32 = arith.constant 0 : i32
    %0 = arith.cmpi eq, %arg1, %c0_i32 : i32
    %1 = arith.extui %0 : i1 to i32
    %c0_i32_0 = arith.constant 0 : i32
    %2 = arith.cmpi ne, %1, %c0_i32_0 : i32
    scf.if %2 {
      %c0_10 = arith.constant 0 : index
      %c0_11 = arith.constant 0 : index
      %21 = vector.load %arg2[%c0_10, %c0_11] : memref<32x128xf32, #tpu.memory_space<vmem>>, vector<32x128xf32>
      %22 = arith.truncf %21 : vector<32x128xf32> to vector<32x128xbf16>
      %c0_12 = arith.constant 0 : index
      %c0_13 = arith.constant 0 : index
      %23 = vector.load %arg3[%c0_12, %c0_13] : memref<128x128xbf16, #tpu.memory_space<vmem>>, vector<128x128xbf16>
      %cst_14 = arith.constant dense<0.000000e+00> : vector<32x128xf32>
      %24 = tpu.matmul %22, %23, %cst_14 {dimension_numbers = #tpu.dot_dimension_numbers<[1], [0], [0], [1], [0, 0, 1, 1], [], []>} : vector<32x128xbf16>, vector<128x128xbf16>, vector<32x128xf32> -> vector<32x128xf32>
      %c0_15 = arith.constant 0 : index
      %c0_16 = arith.constant 0 : index
      %25 = vector.load %arg4[%c0_15, %c0_16] : memref<1x128xf32, #tpu.memory_space<vmem>>, vector<1x128xf32>
      %26 = vector.broadcast %25 : vector<1x128xf32> to vector<32x128xf32>
      %27 = arith.addf %24, %26 : vector<32x128xf32>
      %28 = arith.addf %27, %21 : vector<32x128xf32>
      %cst_17 = arith.constant 0.000000e+00 : f32
      %29 = vector.broadcast %cst_17 : f32 to vector<32x128xf32>
      %30 = arith.maximumf %28, %29 : vector<32x128xf32>
      %c0_18 = arith.constant 0 : index
      %c0_19 = arith.constant 0 : index
      %31 = vector.load %arg10[%c0_18, %c0_19] : memref<32x128xf32, #tpu.memory_space<vmem>>, vector<32x128xf32>
      tpu.vector_store %arg10[%c0_18, %c0_19], %30 {strides = array<i32>} : memref<32x128xf32, #tpu.memory_space<vmem>>, vector<32x128xf32>,
    } else {
    }
    %c0 = arith.constant 0 : index
    %c0_1 = arith.constant 0 : index
    %3 = vector.load %arg10[%c0, %c0_1] : memref<32x128xf32, #tpu.memory_space<vmem>>, vector<32x128xf32>
    %4 = arith.index_cast %arg1 : i32 to index
    %c0_2 = arith.constant 0 : index
    %c0_3 = arith.constant 0 : index
    %5 = vector.load %arg5[%4, %c0_2, %c0_3] : memref<2x128x128xbf16, #tpu.memory_space<vmem>>, vector<1x128x128xbf16>
    %6 = vector.shape_cast %5 : vector<1x128x128xbf16> to vector<128x128xbf16>
    %7 = arith.index_cast %arg1 : i32 to index
    %c0_4 = arith.constant 0 : index
    %c0_5 = arith.constant 0 : index
    %8 = vector.load %arg6[%7, %c0_4, %c0_5] : memref<2x1x128xf32, #tpu.memory_space<vmem>>, vector<1x1x128xf32>
    %9 = vector.shape_cast %8 : vector<1x1x128xf32> to vector<1x128xf32>
    %10 = arith.truncf %3 : vector<32x128xf32> to vector<32x128xbf16>
    %cst = arith.constant dense<0.000000e+00> : vector<32x128xf32>
    %11 = tpu.matmul %10, %6, %cst {dimension_numbers = #tpu.dot_dimension_numbers<[1], [0], [0], [1], [0, 0, 1, 1], [], []>} : vector<32x128xbf16>, vector<128x128xbf16>, vector<32x128xf32> -> vector<32x128xf32>
    %12 = vector.broadcast %9 : vector<1x128xf32> to vector<32x128xf32>
    %13 = arith.addf %11, %12 : vector<32x128xf32>
    %14 = arith.addf %13, %3 : vector<32x128xf32>
    %cst_6 = arith.constant 0.000000e+00 : f32
    %15 = vector.broadcast %cst_6 : f32 to vector<32x128xf32>
    %16 = arith.maximumf %14, %15 : vector<32x128xf32>
    %c0_7 = arith.constant 0 : index
    %c0_8 = arith.constant 0 : index
    %17 = vector.load %arg10[%c0_7, %c0_8] : memref<32x128xf32, #tpu.memory_space<vmem>>, vector<32x128xf32>
    tpu.vector_store %arg10[%c0_7, %c0_8], %16 {strides = array<i32>} : memref<32x128xf32, #tpu.memory_space<vmem>>, vector<32x128xf32>,
    %c1_i32 = arith.constant 1 : i32
    %18 = arith.cmpi eq, %arg1, %c1_i32 : i32
    %19 = arith.extui %18 : i1 to i32
    %c0_i32_9 = arith.constant 0 : i32
    %20 = arith.cmpi ne, %19, %c0_i32_9 : i32
    scf.if %20 {
      %c0_10 = arith.constant 0 : index
      %c0_11 = arith.constant 0 : index
      %21 = vector.load %arg10[%c0_10, %c0_11] : memref<32x128xf32, #tpu.memory_space<vmem>>, vector<32x128xf32>
      %22 = arith.truncf %21 : vector<32x128xf32> to vector<32x128xbf16>
      %c0_12 = arith.constant 0 : index
      %c0_13 = arith.constant 0 : index
      %23 = vector.load %arg7[%c0_12, %c0_13] : memref<128x128xbf16, #tpu.memory_space<vmem>>, vector<128x128xbf16>
      %cst_14 = arith.constant dense<0.000000e+00> : vector<32x128xf32>
      %24 = tpu.matmul %22, %23, %cst_14 {dimension_numbers = #tpu.dot_dimension_numbers<[1], [0], [0], [1], [0, 0, 1, 1], [], []>} : vector<32x128xbf16>, vector<128x128xbf16>, vector<32x128xf32> -> vector<32x128xf32>
      %c0_15 = arith.constant 0 : index
      %c0_16 = arith.constant 0 : index
      %25 = vector.load %arg8[%c0_15, %c0_16] : memref<1x128xf32, #tpu.memory_space<vmem>>, vector<1x128xf32>
      %26 = vector.broadcast %25 : vector<1x128xf32> to vector<32x128xf32>
      %27 = arith.addf %24, %26 : vector<32x128xf32>
      %28 = vector.extract_strided_slice %27 {offsets = [0, 0], sizes = [32, 16], strides = [1, 1]} : vector<32x128xf32> to vector<32x16xf32>
      %c0_17 = arith.constant 0 : index
      %c0_18 = arith.constant 0 : index
      %29 = vector.load %arg9[%c0_17, %c0_18] : memref<32x16xf32, #tpu.memory_space<vmem>>, vector<32x16xf32>
      tpu.vector_store %arg9[%c0_17, %c0_18], %28 {strides = array<i32>} : memref<32x16xf32, #tpu.memory_space<vmem>>, vector<32x16xf32>,
    } else {
    }
    return
  }
  func.func @transform_0(%arg0: i32, %arg1: i32) -> (i32, i32) {
    %c0_i32 = arith.constant 0 : i32
    %c0_i32_0 = arith.constant 0 : i32
    return %arg0, %c0_i32 : i32, i32
  }
  func.func @transform_1(%arg0: i32, %arg1: i32) -> (i32, i32) {
    %c0_i32 = arith.constant 0 : i32
    %c0_i32_0 = arith.constant 0 : i32
    %c0_i32_1 = arith.constant 0 : i32
    return %c0_i32, %c0_i32_0 : i32, i32
  }
  func.func @transform_2(%arg0: i32, %arg1: i32) -> (i32, i32) {
    %c0_i32 = arith.constant 0 : i32
    %c0_i32_0 = arith.constant 0 : i32
    %c0_i32_1 = arith.constant 0 : i32
    return %c0_i32, %c0_i32_0 : i32, i32
  }
  func.func @transform_3(%arg0: i32, %arg1: i32) -> (i32, i32, i32) {
    %c0_i32 = arith.constant 0 : i32
    %c0_i32_0 = arith.constant 0 : i32
    %c0_i32_1 = arith.constant 0 : i32
    %c0_i32_2 = arith.constant 0 : i32
    return %c0_i32, %c0_i32_0, %c0_i32_1 : i32, i32, i32
  }
  func.func @transform_4(%arg0: i32, %arg1: i32) -> (i32, i32, i32) {
    %c0_i32 = arith.constant 0 : i32
    %c0_i32_0 = arith.constant 0 : i32
    %c0_i32_1 = arith.constant 0 : i32
    %c0_i32_2 = arith.constant 0 : i32
    return %c0_i32, %c0_i32_0, %c0_i32_1 : i32, i32, i32
  }
  func.func @transform_5(%arg0: i32, %arg1: i32) -> (i32, i32) {
    %c0_i32 = arith.constant 0 : i32
    %c0_i32_0 = arith.constant 0 : i32
    %c0_i32_1 = arith.constant 0 : i32
    return %c0_i32, %c0_i32_0 : i32, i32
  }
  func.func @transform_6(%arg0: i32, %arg1: i32) -> (i32, i32) {
    %c0_i32 = arith.constant 0 : i32
    %c0_i32_0 = arith.constant 0 : i32
    %c0_i32_1 = arith.constant 0 : i32
    return %c0_i32, %c0_i32_0 : i32, i32
  }
  func.func @transform_7(%arg0: i32, %arg1: i32) -> (i32, i32) {
    %c0_i32 = arith.constant 0 : i32
    %c0_i32_0 = arith.constant 0 : i32
    return %arg0, %c0_i32 : i32, i32
  }
}

module attributes {stable_mosaic.version = 11 : i64} {
  func.func @_mlp_kernel(%arg0: i32, %arg1: i32, %arg2: memref<32x128xf32, #tpu.memory_space<vmem>>, %arg3: memref<128x128xbf16, #tpu.memory_space<vmem>>, %arg4: memref<1x128xf32, #tpu.memory_space<vmem>>, %arg5: memref<2x128x128xbf16, #tpu.memory_space<vmem>>, %arg6: memref<2x1x128xf32, #tpu.memory_space<vmem>>, %arg7: memref<128x128xbf16, #tpu.memory_space<vmem>>, %arg8: memref<1x128xf32, #tpu.memory_space<vmem>>, %arg9: memref<32x16xf32, #tpu.memory_space<vmem>>, %arg10: memref<32x128xf32, #tpu.memory_space<vmem>>) attributes {dimension_semantics = [#tpu.dimension_semantics<parallel>, #tpu.dimension_semantics<arbitrary>], iteration_bounds = array<i64: 8, 2>, scalar_prefetch = 0 : i64, scratch_operands = 1 : i64, tpu.core_type = #tpu.core_type<tc>, window_params = [{transform_indices = @transform_0, window_bounds = array<i64: 32, 128>}, {pipeline_mode = #tpu.pipeline_mode<synchronous>, transform_indices = @transform_1, window_bounds = array<i64: 128, 128>}, {pipeline_mode = #tpu.pipeline_mode<synchronous>, transform_indices = @transform_2, window_bounds = array<i64: 1, 128>}, {pipeline_mode = #tpu.pipeline_mode<synchronous>, transform_indices = @transform_3, window_bounds = array<i64: 2, 128, 128>}, {pipeline_mode = #tpu.pipeline_mode<synchronous>, transform_indices = @transform_4, window_bounds = array<i64: 2, 1, 128>}, {pipeline_mode = #tpu.pipeline_mode<synchronous>, transform_indices = @transform_5, window_bounds = array<i64: 128, 128>}, {pipeline_mode = #tpu.pipeline_mode<synchronous>, transform_indices = @transform_6, window_bounds = array<i64: 1, 128>}, {transform_indices = @transform_7, window_bounds = array<i64: 32, 16>}]} {
    %c0_i32 = arith.constant 0 : i32
    %0 = arith.cmpi eq, %arg1, %c0_i32 : i32
    %1 = arith.extui %0 : i1 to i32
    %c0_i32_0 = arith.constant 0 : i32
    %2 = arith.cmpi ne, %1, %c0_i32_0 : i32
    scf.if %2 {
      %c0_10 = arith.constant 0 : index
      %c0_11 = arith.constant 0 : index
      %21 = vector.load %arg2[%c0_10, %c0_11] : memref<32x128xf32, #tpu.memory_space<vmem>>, vector<32x128xf32>
      %22 = arith.truncf %21 : vector<32x128xf32> to vector<32x128xbf16>
      %c0_12 = arith.constant 0 : index
      %c0_13 = arith.constant 0 : index
      %23 = vector.load %arg3[%c0_12, %c0_13] : memref<128x128xbf16, #tpu.memory_space<vmem>>, vector<128x128xbf16>
      %cst_14 = arith.constant dense<0.000000e+00> : vector<32x128xf32>
      %24 = tpu.matmul %22, %23, %cst_14 {dimension_numbers = #tpu.dot_dimension_numbers<[1], [0], [0], [1], [0, 0, 1, 1], [], []>} : vector<32x128xbf16>, vector<128x128xbf16>, vector<32x128xf32> -> vector<32x128xf32>
      %c0_15 = arith.constant 0 : index
      %c0_16 = arith.constant 0 : index
      %25 = vector.load %arg4[%c0_15, %c0_16] : memref<1x128xf32, #tpu.memory_space<vmem>>, vector<1x128xf32>
      %26 = vector.broadcast %25 : vector<1x128xf32> to vector<32x128xf32>
      %27 = arith.addf %24, %26 : vector<32x128xf32>
      %28 = arith.addf %27, %21 : vector<32x128xf32>
      %cst_17 = arith.constant 0.000000e+00 : f32
      %29 = vector.broadcast %cst_17 : f32 to vector<32x128xf32>
      %30 = arith.maximumf %28, %29 : vector<32x128xf32>
      %c0_18 = arith.constant 0 : index
      %c0_19 = arith.constant 0 : index
      %31 = vector.load %arg10[%c0_18, %c0_19] : memref<32x128xf32, #tpu.memory_space<vmem>>, vector<32x128xf32>
      tpu.vector_store %arg10[%c0_18, %c0_19], %30 {strides = array<i32>} : memref<32x128xf32, #tpu.memory_space<vmem>>, vector<32x128xf32>,
    } else {
    }
    %c0 = arith.constant 0 : index
    %c0_1 = arith.constant 0 : index
    %3 = vector.load %arg10[%c0, %c0_1] : memref<32x128xf32, #tpu.memory_space<vmem>>, vector<32x128xf32>
    %4 = arith.index_cast %arg1 : i32 to index
    %c0_2 = arith.constant 0 : index
    %c0_3 = arith.constant 0 : index
    %5 = vector.load %arg5[%4, %c0_2, %c0_3] : memref<2x128x128xbf16, #tpu.memory_space<vmem>>, vector<1x128x128xbf16>
    %6 = vector.shape_cast %5 : vector<1x128x128xbf16> to vector<128x128xbf16>
    %7 = arith.index_cast %arg1 : i32 to index
    %c0_4 = arith.constant 0 : index
    %c0_5 = arith.constant 0 : index
    %8 = vector.load %arg6[%7, %c0_4, %c0_5] : memref<2x1x128xf32, #tpu.memory_space<vmem>>, vector<1x1x128xf32>
    %9 = vector.shape_cast %8 : vector<1x1x128xf32> to vector<1x128xf32>
    %10 = arith.truncf %3 : vector<32x128xf32> to vector<32x128xbf16>
    %cst = arith.constant dense<0.000000e+00> : vector<32x128xf32>
    %11 = tpu.matmul %10, %6, %cst {dimension_numbers = #tpu.dot_dimension_numbers<[1], [0], [0], [1], [0, 0, 1, 1], [], []>} : vector<32x128xbf16>, vector<128x128xbf16>, vector<32x128xf32> -> vector<32x128xf32>
    %12 = vector.broadcast %9 : vector<1x128xf32> to vector<32x128xf32>
    %13 = arith.addf %11, %12 : vector<32x128xf32>
    %14 = arith.addf %13, %3 : vector<32x128xf32>
    %cst_6 = arith.constant 0.000000e+00 : f32
    %15 = vector.broadcast %cst_6 : f32 to vector<32x128xf32>
    %16 = arith.maximumf %14, %15 : vector<32x128xf32>
    %c0_7 = arith.constant 0 : index
    %c0_8 = arith.constant 0 : index
    %17 = vector.load %arg10[%c0_7, %c0_8] : memref<32x128xf32, #tpu.memory_space<vmem>>, vector<32x128xf32>
    tpu.vector_store %arg10[%c0_7, %c0_8], %16 {strides = array<i32>} : memref<32x128xf32, #tpu.memory_space<vmem>>, vector<32x128xf32>,
    %c1_i32 = arith.constant 1 : i32
    %18 = arith.cmpi eq, %arg1, %c1_i32 : i32
    %19 = arith.extui %18 : i1 to i32
    %c0_i32_9 = arith.constant 0 : i32
    %20 = arith.cmpi ne, %19, %c0_i32_9 : i32
    scf.if %20 {
      %c0_10 = arith.constant 0 : index
      %c0_11 = arith.constant 0 : index
      %21 = vector.load %arg10[%c0_10, %c0_11] : memref<32x128xf32, #tpu.memory_space<vmem>>, vector<32x128xf32>
      %22 = arith.truncf %21 : vector<32x128xf32> to vector<32x128xbf16>
      %c0_12 = arith.constant 0 : index
      %c0_13 = arith.constant 0 : index
      %23 = vector.load %arg7[%c0_12, %c0_13] : memref<128x128xbf16, #tpu.memory_space<vmem>>, vector<128x128xbf16>
      %cst_14 = arith.constant dense<0.000000e+00> : vector<32x128xf32>
      %24 = tpu.matmul %22, %23, %cst_14 {dimension_numbers = #tpu.dot_dimension_numbers<[1], [0], [0], [1], [0, 0, 1, 1], [], []>} : vector<32x128xbf16>, vector<128x128xbf16>, vector<32x128xf32> -> vector<32x128xf32>
      %c0_15 = arith.constant 0 : index
      %c0_16 = arith.constant 0 : index
      %25 = vector.load %arg8[%c0_15, %c0_16] : memref<1x128xf32, #tpu.memory_space<vmem>>, vector<1x128xf32>
      %26 = vector.broadcast %25 : vector<1x128xf32> to vector<32x128xf32>
      %27 = arith.addf %24, %26 : vector<32x128xf32>
      %28 = vector.extract_strided_slice %27 {offsets = [0, 0], sizes = [32, 16], strides = [1, 1]} : vector<32x128xf32> to vector<32x16xf32>
      %c0_17 = arith.constant 0 : index
      %c0_18 = arith.constant 0 : index
      %29 = vector.load %arg9[%c0_17, %c0_18] : memref<32x16xf32, #tpu.memory_space<vmem>>, vector<32x16xf32>
      tpu.vector_store %arg9[%c0_17, %c0_18], %28 {strides = array<i32>} : memref<32x16xf32, #tpu.memory_space<vmem>>, vector<32x16xf32>,
    } else {
    }
    return
  }
  func.func @transform_0(%arg0: i32, %arg1: i32) -> (i32, i32) {
    %c0_i32 = arith.constant 0 : i32
    %c0_i32_0 = arith.constant 0 : i32
    return %arg0, %c0_i32 : i32, i32
  }
  func.func @transform_1(%arg0: i32, %arg1: i32) -> (i32, i32) {
    %c0_i32 = arith.constant 0 : i32
    %c0_i32_0 = arith.constant 0 : i32
    %c0_i32_1 = arith.constant 0 : i32
    return %c0_i32, %c0_i32_0 : i32, i32
  }
  func.func @transform_2(%arg0: i32, %arg1: i32) -> (i32, i32) {
    %c0_i32 = arith.constant 0 : i32
    %c0_i32_0 = arith.constant 0 : i32
    %c0_i32_1 = arith.constant 0 : i32
    return %c0_i32, %c0_i32_0 : i32, i32
  }
  func.func @transform_3(%arg0: i32, %arg1: i32) -> (i32, i32, i32) {
    %c0_i32 = arith.constant 0 : i32
    %c0_i32_0 = arith.constant 0 : i32
    %c0_i32_1 = arith.constant 0 : i32
    %c0_i32_2 = arith.constant 0 : i32
    return %c0_i32, %c0_i32_0, %c0_i32_1 : i32, i32, i32
  }
  func.func @transform_4(%arg0: i32, %arg1: i32) -> (i32, i32, i32) {
    %c0_i32 = arith.constant 0 : i32
    %c0_i32_0 = arith.constant 0 : i32
    %c0_i32_1 = arith.constant 0 : i32
    %c0_i32_2 = arith.constant 0 : i32
    return %c0_i32, %c0_i32_0, %c0_i32_1 : i32, i32, i32
  }
  func.func @transform_5(%arg0: i32, %arg1: i32) -> (i32, i32) {
    %c0_i32 = arith.constant 0 : i32
    %c0_i32_0 = arith.constant 0 : i32
    %c0_i32_1 = arith.constant 0 : i32
    return %c0_i32, %c0_i32_0 : i32, i32
  }
  func.func @transform_6(%arg0: i32, %arg1: i32) -> (i32, i32) {
    %c0_i32 = arith.constant 0 : i32
    %c0_i32_0 = arith.constant 0 : i32
    %c0_i32_1 = arith.constant 0 : i32
    return %c0_i32, %c0_i32_0 : i32, i32
  }
  func.func @transform_7(%arg0: i32, %arg1: i32) -> (i32, i32) {
    %c0_i32 = arith.constant 0 : i32
    %c0_i32_0 = arith.constant 0 : i32
    return %arg0, %c0_i32 : i32, i32
  }
}

</mosaic_0001>

<llo_original>
// kernel: tpu_custom_call.1
$region0: #{tpu_custom_call.1}
  #allocation0 [shape = 'u32[]', space=smem, size = 0x4, offset = 0x4, fixed_abs, tag = 'smem constant byte address 0x4 - core index']
  #allocation1 [shape = 'u32[144,128]{1,0:T(1,128)}', space=vmem, size = 0x12000, scoped, tag = 'internal scratch']
  #allocation2 [shape = 'f32[32,128]{1,0:T(8,128)}', space=vmem, size = 0x4000, scoped, tag = 'scratch operand']
  %s0 = inlined_call_operand.hbm [shape: f32[256,128], index: 0, kind: input, shape index: {}]
  %s1 = inlined_call_operand.hbm [shape: bf16[128,128], index: 1, kind: input, shape index: {}]
  %s2 = inlined_call_operand.vmem [shape: f32[1,128], index: 2, kind: input, shape index: {}]
  %s3 = inlined_call_operand.hbm [shape: bf16[2,128,128], index: 3, kind: input, shape index: {}]
  %s4 = inlined_call_operand.vmem [shape: f32[2,1,128], index: 4, kind: input, shape index: {}]
  %s5 = inlined_call_operand.hbm [shape: bf16[128,128], index: 5, kind: input, shape index: {}]
  %s6 = inlined_call_operand.vmem [shape: f32[1,128], index: 6, kind: input, shape index: {}]
  %s7 = inlined_call_operand.vmem [shape: f32[256,16], index: 7, kind: output, shape index: {}]
  %s8 = sld [smem:[#allocation0]]
  $region85: #{tpu_custom_call.1} parent=0
    _
  %s10 = ssub.s32 1, %s8
  %s11 = scalar_select 0, %s10, %s8
  $region1: #{tpu_custom_call.1} parent=0
    #allocation3 [shape = 'u8[32768]{0}', space=vmem, size = 0x8000, scoped, tag = 'input window, operand 0']
    #allocation4 [shape = 's32[2]{0}', space=sflag, size = 0x8, scoped, tag = 'scoped memory for tpu_custom_call.1']
    #allocation5 [shape = 'u8[32768]{0}', space=vmem, size = 0x8000, scoped, tag = 'input window, operand 1, single buffered']
    #allocation6 [shape = 's32[1]{0}', space=sflag, size = 0x4, scoped, tag = 'scoped memory for tpu_custom_call.1']
    #allocation7 [shape = 'u8[65536]{0}', space=vmem, size = 0x10000, scoped, tag = 'input window, operand 3, single buffered']
    #allocation8 [shape = 'u8[32768]{0}', space=vmem, size = 0x8000, scoped, tag = 'input window, operand 5, single buffered']
    #allocation9 [shape = 's32[1]{0}', space=sflag, size = 0x4, scoped, tag = 'scoped memory for tpu_custom_call.1']
    %12 = vsyncpa [#allocation4], 0
    %s13 = scalar_lea.sflag [#allocation4], 1
    %14 = vsyncpa %s13, 0
    %15 = vsyncpa [#allocation6], 0
    %16 = vsyncpa [#allocation9], 0
    loop: start=0, step=1, limit=18
    $region2: #{tpu_custom_call.1} parent=1 // loop_pre_header
      _
    $region3: #{tpu_custom_call.1} parent=1 // loop_header
      %s18 = sphi 0, %s22
      %p19 = scmp.ge.s32.totalorder %s18, 18
      %s25 = sphi 0, %s37
      %s26 = sphi 0, %s33
      %s27 = sphi 0, %s25
      %s28 = sphi 0, %s26
      %s29 = sphi 0, %s27
      %s30 = sphi 0, %s28
      %s40 = sphi 0, %s42
      %s43 = sphi 0, %s40
      %s44 = sphi 0, %s43
      %s60 = sphi 0, %s44
      %s64 = sphi 0, %s64
      %s66 = sphi 0, %s64
      %s67 = sphi 0, %s66
      %s81 = sphi 0, %s67
      %s85 = sphi 0, %s85
      %s87 = sphi 0, %s85
      %s88 = sphi 0, %s87
      %s102 = sphi 0, %s88
      %s106 = sphi 0, %s106
      %s108 = sphi 0, %s106
      %s109 = sphi 0, %s108
      %s123 = sphi 0, %s109
      %s127 = sphi 0, %s127
      %s129 = sphi 0, %s127
      %s130 = sphi 0, %s129
      %s144 = sphi 0, %s130
      %s148 = sphi 0, %s148
      %s150 = sphi 0, %s148
      %s151 = sphi 0, %s150
      %s165 = sphi 0, %s151
      %s169 = sphi 0, %s169
      %s171 = sphi 0, %s169
      %s172 = sphi 0, %s171
      %s186 = sphi 0, %s172
      %s192 = sphi 0, %s194
      %s195 = sphi 0, %s192
      %s196 = sphi 0, %s195
      %s212 = sphi 0, %s196
    $region4: #{tpu_custom_call.1} parent=1 // loop_header_branch
      %21 = sbr.rel (%p19) target = $region8
    $region5: #{tpu_custom_call.1} parent=1 // loop_body
      %s23 = ssub.s32 %s18, 1
      %s24 = ssub.s32 %s18, 2
      %s31 = sadd.s32 1, %s26
      %p32 = scmp.ge.s32.totalorder %s31, 2
      %s33 = scalar_select %p32, 0, %s31
      %s34 = sadd.s32 1, %s25
      %s35 = scalar_select %p32, %s34, %s25
      %p36 = scmp.ge.s32.totalorder %s35, 8
      %s37 = scalar_select %p36, 0, %s35
      %s38 = ssub.s32 %s25, %s37
      %p39 = scmp.eq.s32.totalorder %s38, 0
      %s41 = sadd.s32 %s40, 1
      %s42 = scalar_select %p39, %s40, %s41
      %p45 = pneg %p39
      %p46 = scmp.eq.s32.totalorder %s18, 15
      %p47 = por %p45, %p46
      %p48 = scmp.ne.s32.totalorder %s40, %s43
      %p49 = scmp.eq.s32.totalorder %s18, 0
      %p50 = por %p48, %p49
      %p51 = scmp.ne.s32.totalorder %s40, %s43
      %p52 = scmp.eq.s32.totalorder %s23, 15
      %p53 = por %p51, %p52
      %p54 = scmp.ne.s32.totalorder %s43, %s44
      %p55 = scmp.eq.s32.totalorder %s23, 0
      %p56 = por %p54, %p55
      %p57 = scmp.ne.s32.totalorder %s43, %s44
      %p58 = scmp.eq.s32.totalorder %s24, 15
      %p59 = por %p57, %p58
      %p61 = scmp.ne.s32.totalorder %s44, %s60
      %p62 = scmp.eq.s32.totalorder %s24, 0
      %p63 = por %p61, %p62
      %s65 = sadd.s32 %s64, 1
      %p68 = scmp.eq.s32.totalorder %s18, 15
      %p69 = scmp.ne.s32.totalorder %s64, %s66
      %p70 = scmp.eq.s32.totalorder %s18, 0
      %p71 = por %p69, %p70
      %p72 = scmp.ne.s32.totalorder %s64, %s66
      %p73 = scmp.eq.s32.totalorder %s23, 15
      %p74 = por %p72, %p73
      %p75 = scmp.ne.s32.totalorder %s66, %s67
      %p76 = scmp.eq.s32.totalorder %s23, 0
      %p77 = por %p75, %p76
      %p78 = scmp.ne.s32.totalorder %s66, %s67
      %p79 = scmp.eq.s32.totalorder %s24, 15
      %p80 = por %p78, %p79
      %p82 = scmp.ne.s32.totalorder %s67, %s81
      %p83 = scmp.eq.s32.totalorder %s24, 0
      %p84 = por %p82, %p83
      %s86 = sadd.s32 %s85, 1
      %p89 = scmp.eq.s32.totalorder %s18, 15
      %p90 = scmp.ne.s32.totalorder %s85, %s87
      %p91 = scmp.eq.s32.totalorder %s18, 0
      %p92 = por %p90, %p91
      %p93 = scmp.ne.s32.totalorder %s85, %s87
      %p94 = scmp.eq.s32.totalorder %s23, 15
      %p95 = por %p93, %p94
      %p96 = scmp.ne.s32.totalorder %s87, %s88
      %p97 = scmp.eq.s32.totalorder %s23, 0
      %p98 = por %p96, %p97
      %p99 = scmp.ne.s32.totalorder %s87, %s88
      %p100 = scmp.eq.s32.totalorder %s24, 15
      %p101 = por %p99, %p100
      %p103 = scmp.ne.s32.totalorder %s88, %s102
      %p104 = scmp.eq.s32.totalorder %s24, 0
      %p105 = por %p103, %p104
      %s107 = sadd.s32 %s106, 1
      %p110 = scmp.eq.s32.totalorder %s18, 15
      %p111 = scmp.ne.s32.totalorder %s106, %s108
      %p112 = scmp.eq.s32.totalorder %s18, 0
      %p113 = por %p111, %p112
      %p114 = scmp.ne.s32.totalorder %s106, %s108
      %p115 = scmp.eq.s32.totalorder %s23, 15
      %p116 = por %p114, %p115
      %p117 = scmp.ne.s32.totalorder %s108, %s109
      %p118 = scmp.eq.s32.totalorder %s23, 0
      %p119 = por %p117, %p118
      %p120 = scmp.ne.s32.totalorder %s108, %s109
      %p121 = scmp.eq.s32.totalorder %s24, 15
      %p122 = por %p120, %p121
      %p124 = scmp.ne.s32.totalorder %s109, %s123
      %p125 = scmp.eq.s32.totalorder %s24, 0
      %p126 = por %p124, %p125
      %s128 = sadd.s32 %s127, 1
      %p131 = scmp.eq.s32.totalorder %s18, 15
      %p132 = scmp.ne.s32.totalorder %s127, %s129
      %p133 = scmp.eq.s32.totalorder %s18, 0
      %p134 = por %p132, %p133
      %p135 = scmp.ne.s32.totalorder %s127, %s129
      %p136 = scmp.eq.s32.totalorder %s23, 15
      %p137 = por %p135, %p136
      %p138 = scmp.ne.s32.totalorder %s129, %s130
      %p139 = scmp.eq.s32.totalorder %s23, 0
      %p140 = por %p138, %p139
      %p141 = scmp.ne.s32.totalorder %s129, %s130
      %p142 = scmp.eq.s32.totalorder %s24, 15
      %p143 = por %p141, %p142
      %p145 = scmp.ne.s32.totalorder %s130, %s144
      %p146 = scmp.eq.s32.totalorder %s24, 0
      %p147 = por %p145, %p146
      %s149 = sadd.s32 %s148, 1
      %p152 = scmp.eq.s32.totalorder %s18, 15
      %p153 = scmp.ne.s32.totalorder %s148, %s150
      %p154 = scmp.eq.s32.totalorder %s18, 0
      %p155 = por %p153, %p154
      %p156 = scmp.ne.s32.totalorder %s148, %s150
      %p157 = scmp.eq.s32.totalorder %s23, 15
      %p158 = por %p156, %p157
      %p159 = scmp.ne.s32.totalorder %s150, %s151
      %p160 = scmp.eq.s32.totalorder %s23, 0
      %p161 = por %p159, %p160
      %p162 = scmp.ne.s32.totalorder %s150, %s151
      %p163 = scmp.eq.s32.totalorder %s24, 15
      %p164 = por %p162, %p163
      %p166 = scmp.ne.s32.totalorder %s151, %s165
      %p167 = scmp.eq.s32.totalorder %s24, 0
      %p168 = por %p166, %p167
      %s170 = sadd.s32 %s169, 1
      %p173 = scmp.eq.s32.totalorder %s18, 15
      %p174 = scmp.ne.s32.totalorder %s169, %s171
      %p175 = scmp.eq.s32.totalorder %s18, 0
      %p176 = por %p174, %p175
      %p177 = scmp.ne.s32.totalorder %s169, %s171
      %p178 = scmp.eq.s32.totalorder %s23, 15
      %p179 = por %p177, %p178
      %p180 = scmp.ne.s32.totalorder %s171, %s172
      %p181 = scmp.eq.s32.totalorder %s23, 0
      %p182 = por %p180, %p181
      %p183 = scmp.ne.s32.totalorder %s171, %s172
      %p184 = scmp.eq.s32.totalorder %s24, 15
      %p185 = por %p183, %p184
      %p187 = scmp.ne.s32.totalorder %s172, %s186
      %p188 = scmp.eq.s32.totalorder %s24, 0
      %p189 = por %p187, %p188
      %s190 = ssub.s32 %s25, %s37
      %p191 = scmp.eq.s32.totalorder %s190, 0
      %s193 = sadd.s32 %s192, 1
      %s194 = scalar_select %p191, %s192, %s193
      %p197 = pneg %p191
      %p198 = scmp.eq.s32.totalorder %s18, 15
      %p199 = por %p197, %p198
      %p200 = scmp.ne.s32.totalorder %s192, %s195
      %p201 = scmp.eq.s32.totalorder %s18, 0
      %p202 = por %p200, %p201
      %p203 = scmp.ne.s32.totalorder %s192, %s195
      %p204 = scmp.eq.s32.totalorder %s23, 15
      %p205 = por %p203, %p204
      %p206 = scmp.ne.s32.totalorder %s195, %s196
      %p207 = scmp.eq.s32.totalorder %s23, 0
      %p208 = por %p206, %p207
      %p209 = scmp.ne.s32.totalorder %s195, %s196
      %p210 = scmp.eq.s32.totalorder %s24, 15
      %p211 = por %p209, %p210
      %p213 = scmp.ne.s32.totalorder %s196, %s212
      %p214 = scmp.eq.s32.totalorder %s24, 0
      %p215 = por %p213, %p214
      %p216 = scmp.le.s32.totalorder 1, %s18
      %p217 = scmp.lt.s32.totalorder %s18, 17
      %p218 = pnand %p216, %p217
      %p219 = pneg %p218
      // Predicated region
      $region9: #{tpu_custom_call.1} parent=5 // pred_check
        _
      $region10: #{tpu_custom_call.1} parent=5 // pred_check_branch
        %221 = sbr.rel (%p218) target = $region12
      $region11: #{tpu_custom_call.1} parent=5 // pred_region
        %s222 = ssub.s32 %s18, 1
        // Predicated region
        $region13: #{tpu_custom_call.1} parent=11 // pred_check
          %p223 = pneg %p77
        $region14: #{tpu_custom_call.1} parent=11 // pred_check_branch
          %225 = sbr.rel (%p223) target = $region16
        $region15: #{tpu_custom_call.1} parent=11 // pred_region
          %s227 = ssub.s32 1024, 1024
          %228 = vsyncadd [#allocation6], %s227
          %s229 = sshll.u32 [#allocation5], 4
          %s230 = int_to_ptr.vmem [resolvable:$true] %s229
          %235 = dma.hbm_to_vmem [thread:$0]  %s1, 1024, %s230, [#allocation6], 64, 64, 4
        $region16: #{tpu_custom_call.1} parent=11 // pred_fallthru
          _
        // Predicated region
        $region17: #{tpu_custom_call.1} parent=11 // pred_check
          %p236 = pneg %p98
        $region18: #{tpu_custom_call.1} parent=11 // pred_check_branch
          %238 = sbr.rel (%p236) target = $region20
        $region19: #{tpu_custom_call.1} parent=11 // pred_region
          _
        $region20: #{tpu_custom_call.1} parent=11 // pred_fallthru
          _
        // Predicated region
        $region21: #{tpu_custom_call.1} parent=11 // pred_check
          %p239 = pneg %p119
        $region22: #{tpu_custom_call.1} parent=11 // pred_check_branch
          %241 = sbr.rel (%p239) target = $region24
        $region23: #{tpu_custom_call.1} parent=11 // pred_region
          %s243 = ssub.s32 2048, 2048
          %244 = vsyncadd [#allocation6], %s243
          %s245 = sshll.u32 [#allocation7], 4
          %s246 = int_to_ptr.vmem [resolvable:$true] %s245
          %251 = dma.hbm_to_vmem [thread:$0]  %s3, 2048, %s246, [#allocation6], 64, 64, 4
        $region24: #{tpu_custom_call.1} parent=11 // pred_fallthru
          _
        // Predicated region
        $region25: #{tpu_custom_call.1} parent=11 // pred_check
          %p252 = pneg %p140
        $region26: #{tpu_custom_call.1} parent=11 // pred_check_branch
          %254 = sbr.rel (%p252) target = $region28
        $region27: #{tpu_custom_call.1} parent=11 // pred_region
          _
        $region28: #{tpu_custom_call.1} parent=11 // pred_fallthru
          _
        // Predicated region
        $region29: #{tpu_custom_call.1} parent=11 // pred_check
          %p255 = pneg %p161
        $region30: #{tpu_custom_call.1} parent=11 // pred_check_branch
          %257 = sbr.rel (%p255) target = $region32
        $region31: #{tpu_custom_call.1} parent=11 // pred_region
          %s259 = ssub.s32 1024, 1024
          %260 = vsyncadd [#allocation9], %s259
          %s261 = sshll.u32 [#allocation8], 4
          %s262 = int_to_ptr.vmem [resolvable:$true] %s261
          %267 = dma.hbm_to_vmem [thread:$0]  %s5, 1024, %s262, [#allocation9], 64, 64, 4
        $region32: #{tpu_custom_call.1} parent=11 // pred_fallthru
          _
        // Predicated region
        $region33: #{tpu_custom_call.1} parent=11 // pred_check
          %p268 = pneg %p182
        $region34: #{tpu_custom_call.1} parent=11 // pred_check_branch
          %270 = sbr.rel (%p268) target = $region36
        $region35: #{tpu_custom_call.1} parent=11 // pred_region
          _
        $region36: #{tpu_custom_call.1} parent=11 // pred_fallthru
          _
      $region12: #{tpu_custom_call.1} parent=5 // pred_fallthru
        _
      %p271 = scmp.lt.s32.totalorder %s18, 16
      // Predicated region
      $region37: #{tpu_custom_call.1} parent=5 // pred_check
        %p272 = pneg %p271
      $region38: #{tpu_custom_call.1} parent=5 // pred_check_branch
        %274 = sbr.rel (%p272) target = $region40
      $region39: #{tpu_custom_call.1} parent=5 // pred_region
        // Predicated region
        $region41: #{tpu_custom_call.1} parent=39 // pred_check
          %p275 = pneg %p50
        $region42: #{tpu_custom_call.1} parent=39 // pred_check_branch
          %277 = sbr.rel (%p275) target = $region44
        $region43: #{tpu_custom_call.1} parent=39 // pred_region
          %s278 = sand.u32 %s40, 1
          %s279 = scalar_lea.sflag [#allocation4], %s278
          %s280 = sand.u32 %s40, 1
          %s281 = smul.addr %s280, 32
          %s282 = scalar_lea.vmem [#allocation3], %s281
          %s283 = smul.u32 4, %s25
          %s285 = ssub.s32 512, 512
          %286 = vsyncadd %s279, %s285
          %s287 = smul.addr %s283, 128
          %s288 = scalar_lea.hbm %s0, %s287
          %s289 = sshll.u32 %s282, 4
          %s290 = int_to_ptr.vmem [resolvable:$true] %s289
          %295 = dma.hbm_to_vmem [thread:$0]  %s288, 512, %s290, %s279, 128, 128, 8
        $region44: #{tpu_custom_call.1} parent=39 // pred_fallthru
          _
      $region40: #{tpu_custom_call.1} parent=5 // pred_fallthru
        _
      %p296 = scmp.le.s32.totalorder 1, %s18
      %p297 = scmp.lt.s32.totalorder %s18, 17
      %p298 = pnand %p296, %p297
      %p299 = pneg %p298
      // Predicated region
      $region45: #{tpu_custom_call.1} parent=5 // pred_check
        _
      $region46: #{tpu_custom_call.1} parent=5 // pred_check_branch
        %301 = sbr.rel (%p298) target = $region48
      $region47: #{tpu_custom_call.1} parent=5 // pred_region
        %s302 = ssub.s32 %s18, 1
        %s303 = sand.u32 %s43, 1
        %s304 = scalar_lea.sflag [#allocation4], %s303
        %s305 = sand.u32 %s43, 1
        %s306 = smul.addr %s305, 32
        %s307 = scalar_lea.vmem [#allocation3], %s306
        // Predicated region
        $region49: #{tpu_custom_call.1} parent=47 // pred_check
          %p308 = pneg %p56
        $region50: #{tpu_custom_call.1} parent=47 // pred_check_branch
          %310 = sbr.rel (%p308) target = $region52
        $region51: #{tpu_custom_call.1} parent=47 // pred_region
          %311 = dma.done %s304, 512
        $region52: #{tpu_custom_call.1} parent=47 // pred_fallthru
          _
        // Predicated region
        $region53: #{tpu_custom_call.1} parent=47 // pred_check
          %p312 = pneg %p77
        $region54: #{tpu_custom_call.1} parent=47 // pred_check_branch
          %314 = sbr.rel (%p312) target = $region56
        $region55: #{tpu_custom_call.1} parent=47 // pred_region
          %315 = dma.done [#allocation6], 1024
        $region56: #{tpu_custom_call.1} parent=47 // pred_fallthru
          _
        // Predicated region
        $region57: #{tpu_custom_call.1} parent=47 // pred_check
          %p316 = pneg %p119
        $region58: #{tpu_custom_call.1} parent=47 // pred_check_branch
          %318 = sbr.rel (%p316) target = $region60
        $region59: #{tpu_custom_call.1} parent=47 // pred_region
          %319 = dma.done [#allocation6], 2048
        $region60: #{tpu_custom_call.1} parent=47 // pred_fallthru
          _
        // Predicated region
        $region61: #{tpu_custom_call.1} parent=47 // pred_check
          %p320 = pneg %p161
        $region62: #{tpu_custom_call.1} parent=47 // pred_check_branch
          %322 = sbr.rel (%p320) target = $region64
        $region63: #{tpu_custom_call.1} parent=47 // pred_region
          %323 = dma.done [#allocation9], 1024
        $region64: #{tpu_custom_call.1} parent=47 // pred_fallthru
          _
        %s324 = sand.u32 %s43, 1
        %s325 = scalar_lea.sflag [#allocation4], %s324
        %s326 = sand.u32 %s43, 1
        %s327 = smul.addr %s326, 32
        %s328 = scalar_lea.vmem [#allocation3], %s327
        %p329 = pneg %p56
        %p330 = pneg %p53
        %p331 = pneg %p77
        %p332 = pneg %p74
        %p333 = pneg %p98
        %p334 = pneg %p95
        %p335 = pneg %p119
        %p336 = pneg %p116
        %p337 = pneg %p140
        %p338 = pneg %p137
        %p339 = pneg %p161
        %p340 = pneg %p158
        %p341 = pneg %p182
        %p342 = pneg %p179
        %p343 = pneg %p208
        %p344 = pneg %p205
        %s345 = smul.u32 4, %s27
        %p346 = scmp.lt.s32.totalorder %s345, 31
        %s347 = scalar_select %p346, %s345, 31
        %s348 = smul.addr %s347, 8
        %s349 = scalar_lea.vmem %s7, %s348
        %s350 = smul.u32 4, %s27
        %s351 = smul.u32 4, %s27
        %p352 = scmp.lt.s32.totalorder %s351, 31
        %s353 = scalar_select %p352, %s351, 31
        %s354 = smul.addr %s353, 8
        %s355 = scalar_lea.vmem %s7, %s354
        %s356 = smul.u32 4, %s27
        %p358 = scmp.eq.s32.totalorder %s28, 0
        // Predicated region
        $region65: #{tpu_custom_call.1} parent=47 // pred_check
          %p359 = pneg %p358
        $region66: #{tpu_custom_call.1} parent=47 // pred_check_branch
          %361 = sbr.rel (%p359) target = $region68
        $region67: #{tpu_custom_call.1} parent=47 // pred_region
          %v362 = vld [vmem:[%s307] sm:$0xff]
          %v363 = vld [vmem:[%s307 + $0x8] sm:$0xff]
          %v364 = vld [vmem:[%s307 + $0x10] sm:$0xff]
          %v365 = vld [vmem:[%s307 + $0x18] sm:$0xff]
          %v366 = vpack.c.bf16 %v363, %v362
          %v367 = vpack.c.bf16 %v365, %v364
          %v368 = vld [vmem:[#allocation5] sm:$0xf]
          %v369 = vld [vmem:[#allocation5 + $0x4] sm:$0xf]
          %v370 = vld [vmem:[#allocation5 + $0x8] sm:$0xf]
          %v371 = vld [vmem:[#allocation5 + $0xc] sm:$0xf]
          %v372 = vld [vmem:[#allocation5 + $0x10] sm:$0xf]
          %v373 = vld [vmem:[#allocation5 + $0x14] sm:$0xf]
          %v374 = vld [vmem:[#allocation5 + $0x18] sm:$0xf]
          %v375 = vld [vmem:[#allocation5 + $0x1c] sm:$0xf]
          %v376 = vld [vmem:[#allocation5 + $0x20] sm:$0xf]
          %v377 = vld [vmem:[#allocation5 + $0x24] sm:$0xf]
          %v378 = vld [vmem:[#allocation5 + $0x28] sm:$0xf]
          %v379 = vld [vmem:[#allocation5 + $0x2c] sm:$0xf]
          %v380 = vld [vmem:[#allocation5 + $0x30] sm:$0xf]
          %v381 = vld [vmem:[#allocation5 + $0x34] sm:$0xf]
          %v382 = vld [vmem:[#allocation5 + $0x38] sm:$0xf]
          %v383 = vld [vmem:[#allocation5 + $0x3c] sm:$0xf]
          %v384 = vld [vmem:[%s2] sm:$0x1]
          %v386 = vlaneseq
          %v387 = vshrl.u32 %v386, 7
          %v388 = vsub.s32 0, %v387
          %v389 = vrot.slane %v384, %v388
          %v407 = vunpack.c.l.b16 %v368
          %v408 = vunpack.c.l.b16 %v369
          %v409 = vunpack.c.l.b16 %v370
          %v410 = vunpack.c.l.b16 %v371
          %v411 = vunpack.c.l.b16 %v372
          %v412 = vunpack.c.l.b16 %v373
          %v413 = vunpack.c.l.b16 %v374
          %v414 = vunpack.c.l.b16 %v375
          %v415 = vunpack.c.l.b16 %v376
          %v416 = vunpack.c.l.b16 %v377
          %v417 = vunpack.c.l.b16 %v378
          %v418 = vunpack.c.l.b16 %v379
          %v419 = vunpack.c.l.b16 %v380
          %v420 = vunpack.c.l.b16 %v381
          %v421 = vunpack.c.l.b16 %v382
          %v422 = vunpack.c.l.b16 %v383
          %v423 = vpack.c.b16 %v408, %v407
          %v424 = vpack.c.b16 %v410, %v409
          %v425 = vpack.c.b16 %v412, %v411
          %v426 = vpack.c.b16 %v414, %v413
          %v427 = vpack.c.b16 %v416, %v415
          %v428 = vpack.c.b16 %v418, %v417
          %v429 = vpack.c.b16 %v420, %v419
          %v430 = vpack.c.b16 %v422, %v421
          %439 = vmatprep.subr.bf16.mxu0 0
          %440 = vmatpush1.bf16.msra.mxu0 %v423
          %441 = vmatprep.subr.bf16.mxu0 0
          %442 = vmatpush1.bf16.msra.mxu0 %v424
          %443 = vmatprep.subr.bf16.mxu0 0
          %444 = vmatpush1.bf16.msra.mxu0 %v425
          %445 = vmatprep.subr.bf16.mxu0 0
          %446 = vmatpush1.bf16.msra.mxu0 %v426
          %447 = vmatprep.subr.bf16.mxu0 0
          %448 = vmatpush1.bf16.msra.mxu0 %v427
          %449 = vmatprep.subr.bf16.mxu0 0
          %450 = vmatpush1.bf16.msra.mxu0 %v428
          %451 = vmatprep.subr.bf16.mxu0 0
          %452 = vmatpush1.bf16.msra.mxu0 %v429
          %453 = vmatprep.subr.bf16.mxu0 0
          %454 = vmatpush1.bf16.msra.mxu0 %v430
          %455 = vmatprep.subr.bf16.mxu0 0
          %456 = vmatpush1.bf16.msra.mxu0 0
          %457 = vmatprep.subr.bf16.mxu0 0
          %458 = vmatpush1.bf16.msra.mxu0 0
          %459 = vmatprep.subr.bf16.mxu0 0
          %460 = vmatpush1.bf16.msra.mxu0 0
          %461 = vmatprep.subr.bf16.mxu0 0
          %462 = vmatpush1.bf16.msra.mxu0 0
          %463 = vmatprep.subr.bf16.mxu0 0
          %464 = vmatpush1.bf16.msra.mxu0 0
          %465 = vmatprep.subr.bf16.mxu0 0
          %466 = vmatpush1.bf16.msra.mxu0 0
          %467 = vmatprep.subr.bf16.mxu0 0
          %468 = vmatpush1.bf16.msra.mxu0 0
          %469 = vmatprep.subr.bf16.mxu0 0
          %470 = vmatpush1.bf16.msra.mxu0 0
          %471 = vmatprep.mubr.bf16.mxu0 0
          %472 = vmatmul.mubr.bf16.gmra.mrb[0].mxu0 %v366
          %v473 = vpop.f32.mrb[0].mxu0
          %v474 = vadd.f32 %v389, %v473
          %v475 = vpop.f32.mrb[0].mxu0
          %v476 = vpop.f32.mrb[0].mxu0
          %v477 = vadd.f32 %v389, %v476
          %v478 = vpop.f32.mrb[0].mxu0
          %479 = vmatprep.mubr.bf16.mxu0 0
          %480 = vmatmul.mubr.bf16.gmra.mrb[0].mxu0 %v367
          %v481 = vpop.f32.mrb[0].mxu0
          %v482 = vadd.f32 %v389, %v481
          %v483 = vpop.f32.mrb[0].mxu0
          %v484 = vpop.f32.mrb[0].mxu0
          %v485 = vadd.f32 %v389, %v484
          %v486 = vpop.f32.mrb[0].mxu0
          %487 = vdwg.mxu0
          %v488 = vadd.f32 %v474, %v362
          %v489 = vadd.f32 %v477, %v363
          %v490 = vadd.f32 %v482, %v364
          %v491 = vadd.f32 %v485, %v365
          %v492 = vmax.f32 %v488, 0.0
          %v493 = vmax.f32 %v489, 0.0
          %v494 = vmax.f32 %v490, 0.0
          %v495 = vmax.f32 %v491, 0.0
          %496 = vst [vmem:[#allocation2] sm:$0xff] %v492
          %497 = vst [vmem:[#allocation2 + $0x8] sm:$0xff] %v493
          %498 = vst [vmem:[#allocation2 + $0x10] sm:$0xff] %v494
          %499 = vst [vmem:[#allocation2 + $0x18] sm:$0xff] %v495
        $region68: #{tpu_custom_call.1} parent=47 // pred_fallthru
          _
        %v500 = vld [vmem:[#allocation2] sm:$0xff]
        %v501 = vld [vmem:[#allocation2 + $0x8] sm:$0xff]
        %v502 = vld [vmem:[#allocation2 + $0x10] sm:$0xff]
        %v503 = vld [vmem:[#allocation2 + $0x18] sm:$0xff]
        %s504 = smul.u32 %s28, 16
        %s505 = smul.addr %s504, 4
        %s506 = scalar_lea.vmem [#allocation7], %s505
        %v507 = vld [vmem:[%s506] sm:$0xf]
        %v508 = vld [vmem:[%s506 + $0x4] sm:$0xf]
        %v509 = vld [vmem:[%s506 + $0x8] sm:$0xf]
        %v510 = vld [vmem:[%s506 + $0xc] sm:$0xf]
        %v511 = vld [vmem:[%s506 + $0x10] sm:$0xf]
        %v512 = vld [vmem:[%s506 + $0x14] sm:$0xf]
        %v513 = vld [vmem:[%s506 + $0x18] sm:$0xf]
        %v514 = vld [vmem:[%s506 + $0x1c] sm:$0xf]
        %v515 = vld [vmem:[%s506 + $0x20] sm:$0xf]
        %v516 = vld [vmem:[%s506 + $0x24] sm:$0xf]
        %v517 = vld [vmem:[%s506 + $0x28] sm:$0xf]
        %v518 = vld [vmem:[%s506 + $0x2c] sm:$0xf]
        %v519 = vld [vmem:[%s506 + $0x30] sm:$0xf]
        %v520 = vld [vmem:[%s506 + $0x34] sm:$0xf]
        %v521 = vld [vmem:[%s506 + $0x38] sm:$0xf]
        %v522 = vld [vmem:[%s506 + $0x3c] sm:$0xf]
        %s523 = scalar_lea.vmem %s4, %s28
        %v524 = vld [vmem:[%s523] sm:$0x1]
        %v525 = vpack.c.bf16 %v501, %v500
        %v526 = vpack.c.bf16 %v503, %v502
        %v528 = vlaneseq
        %v529 = vshrl.u32 %v528, 7
        %v530 = vsub.s32 0, %v529
        %v531 = vrot.slane %v524, %v530
        %v549 = vunpack.c.l.b16 %v507
        %v550 = vunpack.c.l.b16 %v508
        %v551 = vunpack.c.l.b16 %v509
        %v552 = vunpack.c.l.b16 %v510
        %v553 = vunpack.c.l.b16 %v511
        %v554 = vunpack.c.l.b16 %v512
        %v555 = vunpack.c.l.b16 %v513
        %v556 = vunpack.c.l.b16 %v514
        %v557 = vunpack.c.l.b16 %v515
        %v558 = vunpack.c.l.b16 %v516
        %v559 = vunpack.c.l.b16 %v517
        %v560 = vunpack.c.l.b16 %v518
        %v561 = vunpack.c.l.b16 %v519
        %v562 = vunpack.c.l.b16 %v520
        %v563 = vunpack.c.l.b16 %v521
        %v564 = vunpack.c.l.b16 %v522
        %v565 = vpack.c.b16 %v550, %v549
        %v566 = vpack.c.b16 %v552, %v551
        %v567 = vpack.c.b16 %v554, %v553
        %v568 = vpack.c.b16 %v556, %v555
        %v569 = vpack.c.b16 %v558, %v557
        %v570 = vpack.c.b16 %v560, %v559
        %v571 = vpack.c.b16 %v562, %v561
        %v572 = vpack.c.b16 %v564, %v563
        %581 = vmatprep.subr.bf16.mxu0 0
        %582 = vmatpush1.bf16.msra.mxu0 %v565
        %583 = vmatprep.subr.bf16.mxu0 0
        %584 = vmatpush1.bf16.msra.mxu0 %v566
        %585 = vmatprep.subr.bf16.mxu0 0
        %586 = vmatpush1.bf16.msra.mxu0 %v567
        %587 = vmatprep.subr.bf16.mxu0 0
        %588 = vmatpush1.bf16.msra.mxu0 %v568
        %589 = vmatprep.subr.bf16.mxu0 0
        %590 = vmatpush1.bf16.msra.mxu0 %v569
        %591 = vmatprep.subr.bf16.mxu0 0
        %592 = vmatpush1.bf16.msra.mxu0 %v570
        %593 = vmatprep.subr.bf16.mxu0 0
        %594 = vmatpush1.bf16.msra.mxu0 %v571
        %595 = vmatprep.subr.bf16.mxu0 0
        %596 = vmatpush1.bf16.msra.mxu0 %v572
        %597 = vmatprep.subr.bf16.mxu0 0
        %598 = vmatpush1.bf16.msra.mxu0 0
        %599 = vmatprep.subr.bf16.mxu0 0
        %600 = vmatpush1.bf16.msra.mxu0 0
        %601 = vmatprep.subr.bf16.mxu0 0
        %602 = vmatpush1.bf16.msra.mxu0 0
        %603 = vmatprep.subr.bf16.mxu0 0
        %604 = vmatpush1.bf16.msra.mxu0 0
        %605 = vmatprep.subr.bf16.mxu0 0
        %606 = vmatpush1.bf16.msra.mxu0 0
        %607 = vmatprep.subr.bf16.mxu0 0
        %608 = vmatpush1.bf16.msra.mxu0 0
        %609 = vmatprep.subr.bf16.mxu0 0
        %610 = vmatpush1.bf16.msra.mxu0 0
        %611 = vmatprep.subr.bf16.mxu0 0
        %612 = vmatpush1.bf16.msra.mxu0 0
        %613 = vmatprep.mubr.bf16.mxu0 0
        %614 = vmatmul.mubr.bf16.gmra.mrb[0].mxu0 %v525
        %v615 = vpop.f32.mrb[0].mxu0
        %v616 = vadd.f32 %v531, %v615
        %v617 = vpop.f32.mrb[0].mxu0
        %v618 = vpop.f32.mrb[0].mxu0
        %v619 = vadd.f32 %v531, %v618
        %v620 = vpop.f32.mrb[0].mxu0
        %621 = vmatprep.mubr.bf16.mxu0 0
        %622 = vmatmul.mubr.bf16.gmra.mrb[0].mxu0 %v526
        %v623 = vpop.f32.mrb[0].mxu0
        %v624 = vadd.f32 %v531, %v623
        %v625 = vpop.f32.mrb[0].mxu0
        %v626 = vpop.f32.mrb[0].mxu0
        %v627 = vadd.f32 %v531, %v626
        %v628 = vpop.f32.mrb[0].mxu0
        %629 = vdwg.mxu0
        %v630 = vadd.f32 %v616, %v500
        %v631 = vadd.f32 %v619, %v501
        %v632 = vadd.f32 %v624, %v502
        %v633 = vadd.f32 %v627, %v503
        %v634 = vmax.f32 %v630, 0.0
        %v635 = vmax.f32 %v631, 0.0
        %v636 = vmax.f32 %v632, 0.0
        %v637 = vmax.f32 %v633, 0.0
        %638 = vst [vmem:[#allocation2] sm:$0xff] %v634
        %639 = vst [vmem:[#allocation2 + $0x8] sm:$0xff] %v635
        %640 = vst [vmem:[#allocation2 + $0x10] sm:$0xff] %v636
        %641 = vst [vmem:[#allocation2 + $0x18] sm:$0xff] %v637
        %p642 = scmp.eq.s32.totalorder %s28, 1
        // Predicated region
        $region69: #{tpu_custom_call.1} parent=47 // pred_check
          %p643 = pneg %p642
        $region70: #{tpu_custom_call.1} parent=47 // pred_check_branch
          %645 = sbr.rel (%p643) target = $region72
        $region71: #{tpu_custom_call.1} parent=47 // pred_region
          %v646 = vld [vmem:[#allocation2] sm:$0xff]
          %v647 = vld [vmem:[#allocation2 + $0x8] sm:$0xff]
          %v648 = vld [vmem:[#allocation2 + $0x10] sm:$0xff]
          %v649 = vld [vmem:[#allocation2 + $0x18] sm:$0xff]
          %v650 = vpack.c.bf16 %v647, %v646
          %v651 = vpack.c.bf16 %v649, %v648
          %v652 = vld [vmem:[#allocation8] sm:$0xf]
          %v653 = vld [vmem:[#allocation8 + $0x4] sm:$0xf]
          %v654 = vld [vmem:[#allocation8 + $0x8] sm:$0xf]
          %v655 = vld [vmem:[#allocation8 + $0xc] sm:$0xf]
          %v656 = vld [vmem:[#allocation8 + $0x10] sm:$0xf]
          %v657 = vld [vmem:[#allocation8 + $0x14] sm:$0xf]
          %v658 = vld [vmem:[#allocation8 + $0x18] sm:$0xf]
          %v659 = vld [vmem:[#allocation8 + $0x1c] sm:$0xf]
          %v660 = vld [vmem:[#allocation8 + $0x20] sm:$0xf]
          %v661 = vld [vmem:[#allocation8 + $0x24] sm:$0xf]
          %v662 = vld [vmem:[#allocation8 + $0x28] sm:$0xf]
          %v663 = vld [vmem:[#allocation8 + $0x2c] sm:$0xf]
          %v664 = vld [vmem:[#allocation8 + $0x30] sm:$0xf]
          %v665 = vld [vmem:[#allocation8 + $0x34] sm:$0xf]
          %v666 = vld [vmem:[#allocation8 + $0x38] sm:$0xf]
          %v667 = vld [vmem:[#allocation8 + $0x3c] sm:$0xf]
          %v668 = vld [vmem:[%s6] sm:$0x1]
          %v670 = vlaneseq
          %v671 = vshrl.u32 %v670, 7
          %v672 = vsub.s32 0, %v671
          %v673 = vrot.slane %v668, %v672
          %v691 = vunpack.c.l.b16 %v652
          %v692 = vunpack.c.l.b16 %v653
          %v693 = vunpack.c.l.b16 %v654
          %v694 = vunpack.c.l.b16 %v655
          %v695 = vunpack.c.l.b16 %v656
          %v696 = vunpack.c.l.b16 %v657
          %v697 = vunpack.c.l.b16 %v658
          %v698 = vunpack.c.l.b16 %v659
          %v699 = vunpack.c.l.b16 %v660
          %v700 = vunpack.c.l.b16 %v661
          %v701 = vunpack.c.l.b16 %v662
          %v702 = vunpack.c.l.b16 %v663
          %v703 = vunpack.c.l.b16 %v664
          %v704 = vunpack.c.l.b16 %v665
          %v705 = vunpack.c.l.b16 %v666
          %v706 = vunpack.c.l.b16 %v667
          %v707 = vpack.c.b16 %v692, %v691
          %v708 = vpack.c.b16 %v694, %v693
          %v709 = vpack.c.b16 %v696, %v695
          %v710 = vpack.c.b16 %v698, %v697
          %v711 = vpack.c.b16 %v700, %v699
          %v712 = vpack.c.b16 %v702, %v701
          %v713 = vpack.c.b16 %v704, %v703
          %v714 = vpack.c.b16 %v706, %v705
          %723 = vmatprep.subr.bf16.mxu0 0
          %724 = vmatpush1.bf16.msra.mxu0 %v707
          %725 = vmatprep.subr.bf16.mxu0 0
          %726 = vmatpush1.bf16.msra.mxu0 %v708
          %727 = vmatprep.subr.bf16.mxu0 0
          %728 = vmatpush1.bf16.msra.mxu0 %v709
          %729 = vmatprep.subr.bf16.mxu0 0
          %730 = vmatpush1.bf16.msra.mxu0 %v710
          %731 = vmatprep.subr.bf16.mxu0 0
          %732 = vmatpush1.bf16.msra.mxu0 %v711
          %733 = vmatprep.subr.bf16.mxu0 0
          %734 = vmatpush1.bf16.msra.mxu0 %v712
          %735 = vmatprep.subr.bf16.mxu0 0
          %736 = vmatpush1.bf16.msra.mxu0 %v713
          %737 = vmatprep.subr.bf16.mxu0 0
          %738 = vmatpush1.bf16.msra.mxu0 %v714
          %739 = vmatprep.subr.bf16.mxu0 0
          %740 = vmatpush1.bf16.msra.mxu0 0
          %741 = vmatprep.subr.bf16.mxu0 0
          %742 = vmatpush1.bf16.msra.mxu0 0
          %743 = vmatprep.subr.bf16.mxu0 0
          %744 = vmatpush1.bf16.msra.mxu0 0
          %745 = vmatprep.subr.bf16.mxu0 0
          %746 = vmatpush1.bf16.msra.mxu0 0
          %747 = vmatprep.subr.bf16.mxu0 0
          %748 = vmatpush1.bf16.msra.mxu0 0
          %749 = vmatprep.subr.bf16.mxu0 0
          %750 = vmatpush1.bf16.msra.mxu0 0
          %751 = vmatprep.subr.bf16.mxu0 0
          %752 = vmatpush1.bf16.msra.mxu0 0
          %753 = vmatprep.subr.bf16.mxu0 0
          %754 = vmatpush1.bf16.msra.mxu0 0
          %755 = vmatprep.mubr.bf16.mxu0 0
          %756 = vmatmul.mubr.bf16.gmra.mrb[0].mxu0 %v650
          %v757 = vpop.f32.mrb[0].mxu0
          %v758 = vadd.f32 %v673, %v757
          %v759 = vpop.f32.mrb[0].mxu0
          %v760 = vpop.f32.mrb[0].mxu0
          %v761 = vadd.f32 %v673, %v760
          %v762 = vpop.f32.mrb[0].mxu0
          %763 = vmatprep.mubr.bf16.mxu0 0
          %764 = vmatmul.mubr.bf16.gmra.mrb[0].mxu0 %v651
          %v765 = vpop.f32.mrb[0].mxu0
          %v766 = vadd.f32 %v673, %v765
          %v767 = vpop.f32.mrb[0].mxu0
          %v768 = vpop.f32.mrb[0].mxu0
          %v769 = vadd.f32 %v673, %v768
          %v770 = vpop.f32.mrb[0].mxu0
          %771 = vdwg.mxu0
          %vm772 = vcmask 130048
          %773 = vst.msk [vmem:[%s355] sm:$0xff] %vm772, %v758
          %774 = vst.msk [vmem:[%s355 + $0x8] sm:$0xff] %vm772, %v761
          %775 = vst.msk [vmem:[%s355 + $0x10] sm:$0xff] %vm772, %v766
          %776 = vst.msk [vmem:[%s355 + $0x18] sm:$0xff] %vm772, %v769
        $region72: #{tpu_custom_call.1} parent=47 // pred_fallthru
          _
        %s777 = smul.u32 4, %s27
        %p778 = scmp.lt.s32.totalorder %s777, 31
        %s779 = scalar_select %p778, %s777, 31
        %s780 = smul.addr %s779, 8
        %s781 = scalar_lea.vmem %s7, %s780
        // Predicated region
        $region73: #{tpu_custom_call.1} parent=47 // pred_check
          %p782 = pneg %p205
        $region74: #{tpu_custom_call.1} parent=47 // pred_check_branch
          %784 = sbr.rel (%p782) target = $region76
        $region75: #{tpu_custom_call.1} parent=47 // pred_region
          %s785 = smul.u32 4, %s27
        $region76: #{tpu_custom_call.1} parent=47 // pred_fallthru
          _
      $region48: #{tpu_custom_call.1} parent=5 // pred_fallthru
        _
      %p786 = scmp.le.s32.totalorder 2, %s18
      // Predicated region
      $region77: #{tpu_custom_call.1} parent=5 // pred_check
        %p787 = pneg %p786
      $region78: #{tpu_custom_call.1} parent=5 // pred_check_branch
        %789 = sbr.rel (%p787) target = $region80
      $region79: #{tpu_custom_call.1} parent=5 // pred_region
        %s790 = ssub.s32 %s18, 2
        // Predicated region
        $region81: #{tpu_custom_call.1} parent=79 // pred_check
          %p791 = pneg %p211
        $region82: #{tpu_custom_call.1} parent=79 // pred_check_branch
          %793 = sbr.rel (%p791) target = $region84
        $region83: #{tpu_custom_call.1} parent=79 // pred_region
          %s794 = smul.u32 4, %s29
          %p795 = scmp.lt.s32.totalorder %s794, 31
          %s796 = scalar_select %p795, %s794, 31
          %s797 = smul.addr %s796, 8
          %s798 = scalar_lea.vmem %s7, %s797
        $region84: #{tpu_custom_call.1} parent=79 // pred_fallthru
          _
      $region80: #{tpu_custom_call.1} parent=5 // pred_fallthru
        _
    $region6: #{tpu_custom_call.1} parent=1 // loop_footer
      %s22 = sadd.s32 1, %s18
    $region7: #{tpu_custom_call.1} parent=1 // loop_footer_branch
      %17 = sbr.rel target = $region3
    $region8: #{tpu_custom_call.1} parent=1 // loop_exit
      _
    %799 = vsyncpa [#allocation4], 1
    %s800 = scalar_lea.sflag [#allocation4], 1
    %801 = vsyncpa %s800, 1
    %802 = vsyncpa [#allocation6], 1
    %803 = vsyncpa [#allocation9], 1

// kernel: tpu_custom_call.1
$region0: #{tpu_custom_call.1}
  #allocation0 [shape = 'u32[]', space=smem, size = 0x4, offset = 0x4, fixed_abs, tag = 'smem constant byte address 0x4 - core index']
  #allocation1 [shape = 'u32[144,128]{1,0:T(1,128)}', space=vmem, size = 0x12000, scoped, tag = 'internal scratch']
  #allocation2 [shape = 'f32[32,128]{1,0:T(8,128)}', space=vmem, size = 0x4000, scoped, tag = 'scratch operand']
  %s0 = inlined_call_operand.hbm [shape: f32[256,128], index: 0, kind: input, shape index: {}]
  %s1 = inlined_call_operand.hbm [shape: bf16[128,128], index: 1, kind: input, shape index: {}]
  %s2 = inlined_call_operand.vmem [shape: f32[1,128], index: 2, kind: input, shape index: {}]
  %s3 = inlined_call_operand.hbm [shape: bf16[2,128,128], index: 3, kind: input, shape index: {}]
  %s4 = inlined_call_operand.vmem [shape: f32[2,1,128], index: 4, kind: input, shape index: {}]
  %s5 = inlined_call_operand.hbm [shape: bf16[128,128], index: 5, kind: input, shape index: {}]
  %s6 = inlined_call_operand.vmem [shape: f32[1,128], index: 6, kind: input, shape index: {}]
  %s7 = inlined_call_operand.vmem [shape: f32[256,16], index: 7, kind: output, shape index: {}]
  %s8 = sld [smem:[#allocation0]]
  $region85: #{tpu_custom_call.1} parent=0
    _
  %s10 = ssub.s32 1, %s8
  %s11 = scalar_select 0, %s10, %s8
  $region1: #{tpu_custom_call.1} parent=0
    #allocation3 [shape = 'u8[32768]{0}', space=vmem, size = 0x8000, scoped, tag = 'input window, operand 0']
    #allocation4 [shape = 's32[2]{0}', space=sflag, size = 0x8, scoped, tag = 'scoped memory for tpu_custom_call.1']
    #allocation5 [shape = 'u8[32768]{0}', space=vmem, size = 0x8000, scoped, tag = 'input window, operand 1, single buffered']
    #allocation6 [shape = 's32[1]{0}', space=sflag, size = 0x4, scoped, tag = 'scoped memory for tpu_custom_call.1']
    #allocation7 [shape = 'u8[65536]{0}', space=vmem, size = 0x10000, scoped, tag = 'input window, operand 3, single buffered']
    #allocation8 [shape = 'u8[32768]{0}', space=vmem, size = 0x8000, scoped, tag = 'input window, operand 5, single buffered']
    #allocation9 [shape = 's32[1]{0}', space=sflag, size = 0x4, scoped, tag = 'scoped memory for tpu_custom_call.1']
    %12 = vsyncpa [#allocation4], 0
    %s13 = scalar_lea.sflag [#allocation4], 1
    %14 = vsyncpa %s13, 0
    %15 = vsyncpa [#allocation6], 0
    %16 = vsyncpa [#allocation9], 0
    loop: start=0, step=1, limit=18
    $region2: #{tpu_custom_call.1} parent=1 // loop_pre_header
      _
    $region3: #{tpu_custom_call.1} parent=1 // loop_header
      %s18 = sphi 0, %s22
      %p19 = scmp.ge.s32.totalorder %s18, 18
      %s25 = sphi 0, %s37
      %s26 = sphi 0, %s33
      %s27 = sphi 0, %s25
      %s28 = sphi 0, %s26
      %s29 = sphi 0, %s27
      %s30 = sphi 0, %s28
      %s40 = sphi 0, %s42
      %s43 = sphi 0, %s40
      %s44 = sphi 0, %s43
      %s60 = sphi 0, %s44
      %s64 = sphi 0, %s64
      %s66 = sphi 0, %s64
      %s67 = sphi 0, %s66
      %s81 = sphi 0, %s67
      %s85 = sphi 0, %s85
      %s87 = sphi 0, %s85
      %s88 = sphi 0, %s87
      %s102 = sphi 0, %s88
      %s106 = sphi 0, %s106
      %s108 = sphi 0, %s106
      %s109 = sphi 0, %s108
      %s123 = sphi 0, %s109
      %s127 = sphi 0, %s127
      %s129 = sphi 0, %s127
      %s130 = sphi 0, %s129
      %s144 = sphi 0, %s130
      %s148 = sphi 0, %s148
      %s150 = sphi 0, %s148
      %s151 = sphi 0, %s150
      %s165 = sphi 0, %s151
      %s169 = sphi 0, %s169
      %s171 = sphi 0, %s169
      %s172 = sphi 0, %s171
      %s186 = sphi 0, %s172
      %s192 = sphi 0, %s194
      %s195 = sphi 0, %s192
      %s196 = sphi 0, %s195
      %s212 = sphi 0, %s196
    $region4: #{tpu_custom_call.1} parent=1 // loop_header_branch
      %21 = sbr.rel (%p19) target = $region8
    $region5: #{tpu_custom_call.1} parent=1 // loop_body
      %s23 = ssub.s32 %s18, 1
      %s24 = ssub.s32 %s18, 2
      %s31 = sadd.s32 1, %s26
      %p32 = scmp.ge.s32.totalorder %s31, 2
      %s33 = scalar_select %p32, 0, %s31
      %s34 = sadd.s32 1, %s25
      %s35 = scalar_select %p32, %s34, %s25
      %p36 = scmp.ge.s32.totalorder %s35, 8
      %s37 = scalar_select %p36, 0, %s35
      %s38 = ssub.s32 %s25, %s37
      %p39 = scmp.eq.s32.totalorder %s38, 0
      %s41 = sadd.s32 %s40, 1
      %s42 = scalar_select %p39, %s40, %s41
      %p45 = pneg %p39
      %p46 = scmp.eq.s32.totalorder %s18, 15
      %p47 = por %p45, %p46
      %p48 = scmp.ne.s32.totalorder %s40, %s43
      %p49 = scmp.eq.s32.totalorder %s18, 0
      %p50 = por %p48, %p49
      %p51 = scmp.ne.s32.totalorder %s40, %s43
      %p52 = scmp.eq.s32.totalorder %s23, 15
      %p53 = por %p51, %p52
      %p54 = scmp.ne.s32.totalorder %s43, %s44
      %p55 = scmp.eq.s32.totalorder %s23, 0
      %p56 = por %p54, %p55
      %p57 = scmp.ne.s32.totalorder %s43, %s44
      %p58 = scmp.eq.s32.totalorder %s24, 15
      %p59 = por %p57, %p58
      %p61 = scmp.ne.s32.totalorder %s44, %s60
      %p62 = scmp.eq.s32.totalorder %s24, 0
      %p63 = por %p61, %p62
      %s65 = sadd.s32 %s64, 1
      %p68 = scmp.eq.s32.totalorder %s18, 15
      %p69 = scmp.ne.s32.totalorder %s64, %s66
      %p70 = scmp.eq.s32.totalorder %s18, 0
      %p71 = por %p69, %p70
      %p72 = scmp.ne.s32.totalorder %s64, %s66
      %p73 = scmp.eq.s32.totalorder %s23, 15
      %p74 = por %p72, %p73
      %p75 = scmp.ne.s32.totalorder %s66, %s67
      %p76 = scmp.eq.s32.totalorder %s23, 0
      %p77 = por %p75, %p76
      %p78 = scmp.ne.s32.totalorder %s66, %s67
      %p79 = scmp.eq.s32.totalorder %s24, 15
      %p80 = por %p78, %p79
      %p82 = scmp.ne.s32.totalorder %s67, %s81
      %p83 = scmp.eq.s32.totalorder %s24, 0
      %p84 = por %p82, %p83
      %s86 = sadd.s32 %s85, 1
      %p89 = scmp.eq.s32.totalorder %s18, 15
      %p90 = scmp.ne.s32.totalorder %s85, %s87
      %p91 = scmp.eq.s32.totalorder %s18, 0
      %p92 = por %p90, %p91
      %p93 = scmp.ne.s32.totalorder %s85, %s87
      %p94 = scmp.eq.s32.totalorder %s23, 15
      %p95 = por %p93, %p94
      %p96 = scmp.ne.s32.totalorder %s87, %s88
      %p97 = scmp.eq.s32.totalorder %s23, 0
      %p98 = por %p96, %p97
      %p99 = scmp.ne.s32.totalorder %s87, %s88
      %p100 = scmp.eq.s32.totalorder %s24, 15
      %p101 = por %p99, %p100
      %p103 = scmp.ne.s32.totalorder %s88, %s102
      %p104 = scmp.eq.s32.totalorder %s24, 0
      %p105 = por %p103, %p104
      %s107 = sadd.s32 %s106, 1
      %p110 = scmp.eq.s32.totalorder %s18, 15
      %p111 = scmp.ne.s32.totalorder %s106, %s108
      %p112 = scmp.eq.s32.totalorder %s18, 0
      %p113 = por %p111, %p112
      %p114 = scmp.ne.s32.totalorder %s106, %s108
      %p115 = scmp.eq.s32.totalorder %s23, 15
      %p116 = por %p114, %p115
      %p117 = scmp.ne.s32.totalorder %s108, %s109
      %p118 = scmp.eq.s32.totalorder %s23, 0
      %p119 = por %p117, %p118
      %p120 = scmp.ne.s32.totalorder %s108, %s109
      %p121 = scmp.eq.s32.totalorder %s24, 15
      %p122 = por %p120, %p121
      %p124 = scmp.ne.s32.totalorder %s109, %s123
      %p125 = scmp.eq.s32.totalorder %s24, 0
      %p126 = por %p124, %p125
      %s128 = sadd.s32 %s127, 1
      %p131 = scmp.eq.s32.totalorder %s18, 15
      %p132 = scmp.ne.s32.totalorder %s127, %s129
      %p133 = scmp.eq.s32.totalorder %s18, 0
      %p134 = por %p132, %p133
      %p135 = scmp.ne.s32.totalorder %s127, %s129
      %p136 = scmp.eq.s32.totalorder %s23, 15
      %p137 = por %p135, %p136
      %p138 = scmp.ne.s32.totalorder %s129, %s130
      %p139 = scmp.eq.s32.totalorder %s23, 0
      %p140 = por %p138, %p139
      %p141 = scmp.ne.s32.totalorder %s129, %s130
      %p142 = scmp.eq.s32.totalorder %s24, 15
      %p143 = por %p141, %p142
      %p145 = scmp.ne.s32.totalorder %s130, %s144
      %p146 = scmp.eq.s32.totalorder %s24, 0
      %p147 = por %p145, %p146
      %s149 = sadd.s32 %s148, 1
      %p152 = scmp.eq.s32.totalorder %s18, 15
      %p153 = scmp.ne.s32.totalorder %s148, %s150
      %p154 = scmp.eq.s32.totalorder %s18, 0
      %p155 = por %p153, %p154
      %p156 = scmp.ne.s32.totalorder %s148, %s150
      %p157 = scmp.eq.s32.totalorder %s23, 15
      %p158 = por %p156, %p157
      %p159 = scmp.ne.s32.totalorder %s150, %s151
      %p160 = scmp.eq.s32.totalorder %s23, 0
      %p161 = por %p159, %p160
      %p162 = scmp.ne.s32.totalorder %s150, %s151
      %p163 = scmp.eq.s32.totalorder %s24, 15
      %p164 = por %p162, %p163
      %p166 = scmp.ne.s32.totalorder %s151, %s165
      %p167 = scmp.eq.s32.totalorder %s24, 0
      %p168 = por %p166, %p167
      %s170 = sadd.s32 %s169, 1
      %p173 = scmp.eq.s32.totalorder %s18, 15
      %p174 = scmp.ne.s32.totalorder %s169, %s171
      %p175 = scmp.eq.s32.totalorder %s18, 0
      %p176 = por %p174, %p175
      %p177 = scmp.ne.s32.totalorder %s169, %s171
      %p178 = scmp.eq.s32.totalorder %s23, 15
      %p179 = por %p177, %p178
      %p180 = scmp.ne.s32.totalorder %s171, %s172
      %p181 = scmp.eq.s32.totalorder %s23, 0
      %p182 = por %p180, %p181
      %p183 = scmp.ne.s32.totalorder %s171, %s172
      %p184 = scmp.eq.s32.totalorder %s24, 15
      %p185 = por %p183, %p184
      %p187 = scmp.ne.s32.totalorder %s172, %s186
      %p188 = scmp.eq.s32.totalorder %s24, 0
      %p189 = por %p187, %p188
      %s190 = ssub.s32 %s25, %s37
      %p191 = scmp.eq.s32.totalorder %s190, 0
      %s193 = sadd.s32 %s192, 1
      %s194 = scalar_select %p191, %s192, %s193
      %p197 = pneg %p191
      %p198 = scmp.eq.s32.totalorder %s18, 15
      %p199 = por %p197, %p198
      %p200 = scmp.ne.s32.totalorder %s192, %s195
      %p201 = scmp.eq.s32.totalorder %s18, 0
      %p202 = por %p200, %p201
      %p203 = scmp.ne.s32.totalorder %s192, %s195
      %p204 = scmp.eq.s32.totalorder %s23, 15
      %p205 = por %p203, %p204
      %p206 = scmp.ne.s32.totalorder %s195, %s196
      %p207 = scmp.eq.s32.totalorder %s23, 0
      %p208 = por %p206, %p207
      %p209 = scmp.ne.s32.totalorder %s195, %s196
      %p210 = scmp.eq.s32.totalorder %s24, 15
      %p211 = por %p209, %p210
      %p213 = scmp.ne.s32.totalorder %s196, %s212
      %p214 = scmp.eq.s32.totalorder %s24, 0
      %p215 = por %p213, %p214
      %p216 = scmp.le.s32.totalorder 1, %s18
      %p217 = scmp.lt.s32.totalorder %s18, 17
      %p218 = pnand %p216, %p217
      %p219 = pneg %p218
      // Predicated region
      $region9: #{tpu_custom_call.1} parent=5 // pred_check
        _
      $region10: #{tpu_custom_call.1} parent=5 // pred_check_branch
        %221 = sbr.rel (%p218) target = $region12
      $region11: #{tpu_custom_call.1} parent=5 // pred_region
        %s222 = ssub.s32 %s18, 1
        // Predicated region
        $region13: #{tpu_custom_call.1} parent=11 // pred_check
          %p223 = pneg %p77
        $region14: #{tpu_custom_call.1} parent=11 // pred_check_branch
          %225 = sbr.rel (%p223) target = $region16
        $region15: #{tpu_custom_call.1} parent=11 // pred_region
          %s227 = ssub.s32 1024, 1024
          %228 = vsyncadd [#allocation6], %s227
          %s229 = sshll.u32 [#allocation5], 4
          %s230 = int_to_ptr.vmem [resolvable:$true] %s229
          %235 = dma.hbm_to_vmem [thread:$0]  %s1, 1024, %s230, [#allocation6], 64, 64, 4
        $region16: #{tpu_custom_call.1} parent=11 // pred_fallthru
          _
        // Predicated region
        $region17: #{tpu_custom_call.1} parent=11 // pred_check
          %p236 = pneg %p98
        $region18: #{tpu_custom_call.1} parent=11 // pred_check_branch
          %238 = sbr.rel (%p236) target = $region20
        $region19: #{tpu_custom_call.1} parent=11 // pred_region
          _
        $region20: #{tpu_custom_call.1} parent=11 // pred_fallthru
          _
        // Predicated region
        $region21: #{tpu_custom_call.1} parent=11 // pred_check
          %p239 = pneg %p119
        $region22: #{tpu_custom_call.1} parent=11 // pred_check_branch
          %241 = sbr.rel (%p239) target = $region24
        $region23: #{tpu_custom_call.1} parent=11 // pred_region
          %s243 = ssub.s32 2048, 2048
          %244 = vsyncadd [#allocation6], %s243
          %s245 = sshll.u32 [#allocation7], 4
          %s246 = int_to_ptr.vmem [resolvable:$true] %s245
          %251 = dma.hbm_to_vmem [thread:$0]  %s3, 2048, %s246, [#allocation6], 64, 64, 4
        $region24: #{tpu_custom_call.1} parent=11 // pred_fallthru
          _
        // Predicated region
        $region25: #{tpu_custom_call.1} parent=11 // pred_check
          %p252 = pneg %p140
        $region26: #{tpu_custom_call.1} parent=11 // pred_check_branch
          %254 = sbr.rel (%p252) target = $region28
        $region27: #{tpu_custom_call.1} parent=11 // pred_region
          _
        $region28: #{tpu_custom_call.1} parent=11 // pred_fallthru
          _
        // Predicated region
        $region29: #{tpu_custom_call.1} parent=11 // pred_check
          %p255 = pneg %p161
        $region30: #{tpu_custom_call.1} parent=11 // pred_check_branch
          %257 = sbr.rel (%p255) target = $region32
        $region31: #{tpu_custom_call.1} parent=11 // pred_region
          %s259 = ssub.s32 1024, 1024
          %260 = vsyncadd [#allocation9], %s259
          %s261 = sshll.u32 [#allocation8], 4
          %s262 = int_to_ptr.vmem [resolvable:$true] %s261
          %267 = dma.hbm_to_vmem [thread:$0]  %s5, 1024, %s262, [#allocation9], 64, 64, 4
        $region32: #{tpu_custom_call.1} parent=11 // pred_fallthru
          _
        // Predicated region
        $region33: #{tpu_custom_call.1} parent=11 // pred_check
          %p268 = pneg %p182
        $region34: #{tpu_custom_call.1} parent=11 // pred_check_branch
          %270 = sbr.rel (%p268) target = $region36
        $region35: #{tpu_custom_call.1} parent=11 // pred_region
          _
        $region36: #{tpu_custom_call.1} parent=11 // pred_fallthru
          _
      $region12: #{tpu_custom_call.1} parent=5 // pred_fallthru
        _
      %p271 = scmp.lt.s32.totalorder %s18, 16
      // Predicated region
      $region37: #{tpu_custom_call.1} parent=5 // pred_check
        %p272 = pneg %p271
      $region38: #{tpu_custom_call.1} parent=5 // pred_check_branch
        %274 = sbr.rel (%p272) target = $region40
      $region39: #{tpu_custom_call.1} parent=5 // pred_region
        // Predicated region
        $region41: #{tpu_custom_call.1} parent=39 // pred_check
          %p275 = pneg %p50
        $region42: #{tpu_custom_call.1} parent=39 // pred_check_branch
          %277 = sbr.rel (%p275) target = $region44
        $region43: #{tpu_custom_call.1} parent=39 // pred_region
          %s278 = sand.u32 %s40, 1
          %s279 = scalar_lea.sflag [#allocation4], %s278
          %s280 = sand.u32 %s40, 1
          %s281 = smul.addr %s280, 32
          %s282 = scalar_lea.vmem [#allocation3], %s281
          %s283 = smul.u32 4, %s25
          %s285 = ssub.s32 512, 512
          %286 = vsyncadd %s279, %s285
          %s287 = smul.addr %s283, 128
          %s288 = scalar_lea.hbm %s0, %s287
          %s289 = sshll.u32 %s282, 4
          %s290 = int_to_ptr.vmem [resolvable:$true] %s289
          %295 = dma.hbm_to_vmem [thread:$0]  %s288, 512, %s290, %s279, 128, 128, 8
        $region44: #{tpu_custom_call.1} parent=39 // pred_fallthru
          _
      $region40: #{tpu_custom_call.1} parent=5 // pred_fallthru
        _
      %p296 = scmp.le.s32.totalorder 1, %s18
      %p297 = scmp.lt.s32.totalorder %s18, 17
      %p298 = pnand %p296, %p297
      %p299 = pneg %p298
      // Predicated region
      $region45: #{tpu_custom_call.1} parent=5 // pred_check
        _
      $region46: #{tpu_custom_call.1} parent=5 // pred_check_branch
        %301 = sbr.rel (%p298) target = $region48
      $region47: #{tpu_custom_call.1} parent=5 // pred_region
        %s302 = ssub.s32 %s18, 1
        %s303 = sand.u32 %s43, 1
        %s304 = scalar_lea.sflag [#allocation4], %s303
        %s305 = sand.u32 %s43, 1
        %s306 = smul.addr %s305, 32
        %s307 = scalar_lea.vmem [#allocation3], %s306
        // Predicated region
        $region49: #{tpu_custom_call.1} parent=47 // pred_check
          %p308 = pneg %p56
        $region50: #{tpu_custom_call.1} parent=47 // pred_check_branch
          %310 = sbr.rel (%p308) target = $region52
        $region51: #{tpu_custom_call.1} parent=47 // pred_region
          %311 = dma.done %s304, 512
        $region52: #{tpu_custom_call.1} parent=47 // pred_fallthru
          _
        // Predicated region
        $region53: #{tpu_custom_call.1} parent=47 // pred_check
          %p312 = pneg %p77
        $region54: #{tpu_custom_call.1} parent=47 // pred_check_branch
          %314 = sbr.rel (%p312) target = $region56
        $region55: #{tpu_custom_call.1} parent=47 // pred_region
          %315 = dma.done [#allocation6], 1024
        $region56: #{tpu_custom_call.1} parent=47 // pred_fallthru
          _
        // Predicated region
        $region57: #{tpu_custom_call.1} parent=47 // pred_check
          %p316 = pneg %p119
        $region58: #{tpu_custom_call.1} parent=47 // pred_check_branch
          %318 = sbr.rel (%p316) target = $region60
        $region59: #{tpu_custom_call.1} parent=47 // pred_region
          %319 = dma.done [#allocation6], 2048
        $region60: #{tpu_custom_call.1} parent=47 // pred_fallthru
          _
        // Predicated region
        $region61: #{tpu_custom_call.1} parent=47 // pred_check
          %p320 = pneg %p161
        $region62: #{tpu_custom_call.1} parent=47 // pred_check_branch
          %322 = sbr.rel (%p320) target = $region64
        $region63: #{tpu_custom_call.1} parent=47 // pred_region
          %323 = dma.done [#allocation9], 1024
        $region64: #{tpu_custom_call.1} parent=47 // pred_fallthru
          _
        %s324 = sand.u32 %s43, 1
        %s325 = scalar_lea.sflag [#allocation4], %s324
        %s326 = sand.u32 %s43, 1
        %s327 = smul.addr %s326, 32
        %s328 = scalar_lea.vmem [#allocation3], %s327
        %p329 = pneg %p56
        %p330 = pneg %p53
        %p331 = pneg %p77
        %p332 = pneg %p74
        %p333 = pneg %p98
        %p334 = pneg %p95
        %p335 = pneg %p119
        %p336 = pneg %p116
        %p337 = pneg %p140
        %p338 = pneg %p137
        %p339 = pneg %p161
        %p340 = pneg %p158
        %p341 = pneg %p182
        %p342 = pneg %p179
        %p343 = pneg %p208
        %p344 = pneg %p205
        %s345 = smul.u32 4, %s27
        %p346 = scmp.lt.s32.totalorder %s345, 31
        %s347 = scalar_select %p346, %s345, 31
        %s348 = smul.addr %s347, 8
        %s349 = scalar_lea.vmem %s7, %s348
        %s350 = smul.u32 4, %s27
        %s351 = smul.u32 4, %s27
        %p352 = scmp.lt.s32.totalorder %s351, 31
        %s353 = scalar_select %p352, %s351, 31
        %s354 = smul.addr %s353, 8
        %s355 = scalar_lea.vmem %s7, %s354
        %s356 = smul.u32 4, %s27
        %p358 = scmp.eq.s32.totalorder %s28, 0
        // Predicated region
        $region65: #{tpu_custom_call.1} parent=47 // pred_check
          %p359 = pneg %p358
        $region66: #{tpu_custom_call.1} parent=47 // pred_check_branch
          %361 = sbr.rel (%p359) target = $region68
        $region67: #{tpu_custom_call.1} parent=47 // pred_region
          %v362 = vld [vmem:[%s307] sm:$0xff]
          %v363 = vld [vmem:[%s307 + $0x8] sm:$0xff]
          %v364 = vld [vmem:[%s307 + $0x10] sm:$0xff]
          %v365 = vld [vmem:[%s307 + $0x18] sm:$0xff]
          %v366 = vpack.c.bf16 %v363, %v362
          %v367 = vpack.c.bf16 %v365, %v364
          %v368 = vld [vmem:[#allocation5] sm:$0xf]
          %v369 = vld [vmem:[#allocation5 + $0x4] sm:$0xf]
          %v370 = vld [vmem:[#allocation5 + $0x8] sm:$0xf]
          %v371 = vld [vmem:[#allocation5 + $0xc] sm:$0xf]
          %v372 = vld [vmem:[#allocation5 + $0x10] sm:$0xf]
          %v373 = vld [vmem:[#allocation5 + $0x14] sm:$0xf]
          %v374 = vld [vmem:[#allocation5 + $0x18] sm:$0xf]
          %v375 = vld [vmem:[#allocation5 + $0x1c] sm:$0xf]
          %v376 = vld [vmem:[#allocation5 + $0x20] sm:$0xf]
          %v377 = vld [vmem:[#allocation5 + $0x24] sm:$0xf]
          %v378 = vld [vmem:[#allocation5 + $0x28] sm:$0xf]
          %v379 = vld [vmem:[#allocation5 + $0x2c] sm:$0xf]
          %v380 = vld [vmem:[#allocation5 + $0x30] sm:$0xf]
          %v381 = vld [vmem:[#allocation5 + $0x34] sm:$0xf]
          %v382 = vld [vmem:[#allocation5 + $0x38] sm:$0xf]
          %v383 = vld [vmem:[#allocation5 + $0x3c] sm:$0xf]
          %v384 = vld [vmem:[%s2] sm:$0x1]
          %v386 = vlaneseq
          %v387 = vshrl.u32 %v386, 7
          %v388 = vsub.s32 0, %v387
          %v389 = vrot.slane %v384, %v388
          %v407 = vunpack.c.l.b16 %v368
          %v408 = vunpack.c.l.b16 %v369
          %v409 = vunpack.c.l.b16 %v370
          %v410 = vunpack.c.l.b16 %v371
          %v411 = vunpack.c.l.b16 %v372
          %v412 = vunpack.c.l.b16 %v373
          %v413 = vunpack.c.l.b16 %v374
          %v414 = vunpack.c.l.b16 %v375
          %v415 = vunpack.c.l.b16 %v376
          %v416 = vunpack.c.l.b16 %v377
          %v417 = vunpack.c.l.b16 %v378
          %v418 = vunpack.c.l.b16 %v379
          %v419 = vunpack.c.l.b16 %v380
          %v420 = vunpack.c.l.b16 %v381
          %v421 = vunpack.c.l.b16 %v382
          %v422 = vunpack.c.l.b16 %v383
          %v423 = vpack.c.b16 %v408, %v407
          %v424 = vpack.c.b16 %v410, %v409
          %v425 = vpack.c.b16 %v412, %v411
          %v426 = vpack.c.b16 %v414, %v413
          %v427 = vpack.c.b16 %v416, %v415
          %v428 = vpack.c.b16 %v418, %v417
          %v429 = vpack.c.b16 %v420, %v419
          %v430 = vpack.c.b16 %v422, %v421
          %439 = vmatprep.subr.bf16.mxu0 0
          %440 = vmatpush1.bf16.msra.mxu0 %v423
          %441 = vmatprep.subr.bf16.mxu0 0
          %442 = vmatpush1.bf16.msra.mxu0 %v424
          %443 = vmatprep.subr.bf16.mxu0 0
          %444 = vmatpush1.bf16.msra.mxu0 %v425
          %445 = vmatprep.subr.bf16.mxu0 0
          %446 = vmatpush1.bf16.msra.mxu0 %v426
          %447 = vmatprep.subr.bf16.mxu0 0
          %448 = vmatpush1.bf16.msra.mxu0 %v427
          %449 = vmatprep.subr.bf16.mxu0 0
          %450 = vmatpush1.bf16.msra.mxu0 %v428
          %451 = vmatprep.subr.bf16.mxu0 0
          %452 = vmatpush1.bf16.msra.mxu0 %v429
          %453 = vmatprep.subr.bf16.mxu0 0
          %454 = vmatpush1.bf16.msra.mxu0 %v430
          %455 = vmatprep.subr.bf16.mxu0 0
          %456 = vmatpush1.bf16.msra.mxu0 0
          %457 = vmatprep.subr.bf16.mxu0 0
          %458 = vmatpush1.bf16.msra.mxu0 0
          %459 = vmatprep.subr.bf16.mxu0 0
          %460 = vmatpush1.bf16.msra.mxu0 0
          %461 = vmatprep.subr.bf16.mxu0 0
          %462 = vmatpush1.bf16.msra.mxu0 0
          %463 = vmatprep.subr.bf16.mxu0 0
          %464 = vmatpush1.bf16.msra.mxu0 0
          %465 = vmatprep.subr.bf16.mxu0 0
          %466 = vmatpush1.bf16.msra.mxu0 0
          %467 = vmatprep.subr.bf16.mxu0 0
          %468 = vmatpush1.bf16.msra.mxu0 0
          %469 = vmatprep.subr.bf16.mxu0 0
          %470 = vmatpush1.bf16.msra.mxu0 0
          %471 = vmatprep.mubr.bf16.mxu0 0
          %472 = vmatmul.mubr.bf16.gmra.mrb[0].mxu0 %v366
          %v473 = vpop.f32.mrb[0].mxu0
          %v474 = vadd.f32 %v389, %v473
          %v475 = vpop.f32.mrb[0].mxu0
          %v476 = vpop.f32.mrb[0].mxu0
          %v477 = vadd.f32 %v389, %v476
          %v478 = vpop.f32.mrb[0].mxu0
          %479 = vmatprep.mubr.bf16.mxu0 0
          %480 = vmatmul.mubr.bf16.gmra.mrb[0].mxu0 %v367
          %v481 = vpop.f32.mrb[0].mxu0
          %v482 = vadd.f32 %v389, %v481
          %v483 = vpop.f32.mrb[0].mxu0
          %v484 = vpop.f32.mrb[0].mxu0
          %v485 = vadd.f32 %v389, %v484
          %v486 = vpop.f32.mrb[0].mxu0
          %487 = vdwg.mxu0
          %v488 = vadd.f32 %v474, %v362
          %v489 = vadd.f32 %v477, %v363
          %v490 = vadd.f32 %v482, %v364
          %v491 = vadd.f32 %v485, %v365
          %v492 = vmax.f32 %v488, 0.0
          %v493 = vmax.f32 %v489, 0.0
          %v494 = vmax.f32 %v490, 0.0
          %v495 = vmax.f32 %v491, 0.0
          %496 = vst [vmem:[#allocation2] sm:$0xff] %v492
          %497 = vst [vmem:[#allocation2 + $0x8] sm:$0xff] %v493
          %498 = vst [vmem:[#allocation2 + $0x10] sm:$0xff] %v494
          %499 = vst [vmem:[#allocation2 + $0x18] sm:$0xff] %v495
        $region68: #{tpu_custom_call.1} parent=47 // pred_fallthru
          _
        %v500 = vld [vmem:[#allocation2] sm:$0xff]
        %v501 = vld [vmem:[#allocation2 + $0x8] sm:$0xff]
        %v502 = vld [vmem:[#allocation2 + $0x10] sm:$0xff]
        %v503 = vld [vmem:[#allocation2 + $0x18] sm:$0xff]
        %s504 = smul.u32 %s28, 16
        %s505 = smul.addr %s504, 4
        %s506 = scalar_lea.vmem [#allocation7], %s505
        %v507 = vld [vmem:[%s506] sm:$0xf]
        %v508 = vld [vmem:[%s506 + $0x4] sm:$0xf]
        %v509 = vld [vmem:[%s506 + $0x8] sm:$0xf]
        %v510 = vld [vmem:[%s506 + $0xc] sm:$0xf]
        %v511 = vld [vmem:[%s506 + $0x10] sm:$0xf]
        %v512 = vld [vmem:[%s506 + $0x14] sm:$0xf]
        %v513 = vld [vmem:[%s506 + $0x18] sm:$0xf]
        %v514 = vld [vmem:[%s506 + $0x1c] sm:$0xf]
        %v515 = vld [vmem:[%s506 + $0x20] sm:$0xf]
        %v516 = vld [vmem:[%s506 + $0x24] sm:$0xf]
        %v517 = vld [vmem:[%s506 + $0x28] sm:$0xf]
        %v518 = vld [vmem:[%s506 + $0x2c] sm:$0xf]
        %v519 = vld [vmem:[%s506 + $0x30] sm:$0xf]
        %v520 = vld [vmem:[%s506 + $0x34] sm:$0xf]
        %v521 = vld [vmem:[%s506 + $0x38] sm:$0xf]
        %v522 = vld [vmem:[%s506 + $0x3c] sm:$0xf]
        %s523 = scalar_lea.vmem %s4, %s28
        %v524 = vld [vmem:[%s523] sm:$0x1]
        %v525 = vpack.c.bf16 %v501, %v500
        %v526 = vpack.c.bf16 %v503, %v502
        %v528 = vlaneseq
        %v529 = vshrl.u32 %v528, 7
        %v530 = vsub.s32 0, %v529
        %v531 = vrot.slane %v524, %v530
        %v549 = vunpack.c.l.b16 %v507
        %v550 = vunpack.c.l.b16 %v508
        %v551 = vunpack.c.l.b16 %v509
        %v552 = vunpack.c.l.b16 %v510
        %v553 = vunpack.c.l.b16 %v511
        %v554 = vunpack.c.l.b16 %v512
        %v555 = vunpack.c.l.b16 %v513
        %v556 = vunpack.c.l.b16 %v514
        %v557 = vunpack.c.l.b16 %v515
        %v558 = vunpack.c.l.b16 %v516
        %v559 = vunpack.c.l.b16 %v517
        %v560 = vunpack.c.l.b16 %v518
        %v561 = vunpack.c.l.b16 %v519
        %v562 = vunpack.c.l.b16 %v520
        %v563 = vunpack.c.l.b16 %v521
        %v564 = vunpack.c.l.b16 %v522
        %v565 = vpack.c.b16 %v550, %v549
        %v566 = vpack.c.b16 %v552, %v551
        %v567 = vpack.c.b16 %v554, %v553
        %v568 = vpack.c.b16 %v556, %v555
        %v569 = vpack.c.b16 %v558, %v557
        %v570 = vpack.c.b16 %v560, %v559
        %v571 = vpack.c.b16 %v562, %v561
        %v572 = vpack.c.b16 %v564, %v563
        %581 = vmatprep.subr.bf16.mxu0 0
        %582 = vmatpush1.bf16.msra.mxu0 %v565
        %583 = vmatprep.subr.bf16.mxu0 0
        %584 = vmatpush1.bf16.msra.mxu0 %v566
        %585 = vmatprep.subr.bf16.mxu0 0
        %586 = vmatpush1.bf16.msra.mxu0 %v567
        %587 = vmatprep.subr.bf16.mxu0 0
        %588 = vmatpush1.bf16.msra.mxu0 %v568
        %589 = vmatprep.subr.bf16.mxu0 0
        %590 = vmatpush1.bf16.msra.mxu0 %v569
        %591 = vmatprep.subr.bf16.mxu0 0
        %592 = vmatpush1.bf16.msra.mxu0 %v570
        %593 = vmatprep.subr.bf16.mxu0 0
        %594 = vmatpush1.bf16.msra.mxu0 %v571
        %595 = vmatprep.subr.bf16.mxu0 0
        %596 = vmatpush1.bf16.msra.mxu0 %v572
        %597 = vmatprep.subr.bf16.mxu0 0
        %598 = vmatpush1.bf16.msra.mxu0 0
        %599 = vmatprep.subr.bf16.mxu0 0
        %600 = vmatpush1.bf16.msra.mxu0 0
        %601 = vmatprep.subr.bf16.mxu0 0
        %602 = vmatpush1.bf16.msra.mxu0 0
        %603 = vmatprep.subr.bf16.mxu0 0
        %604 = vmatpush1.bf16.msra.mxu0 0
        %605 = vmatprep.subr.bf16.mxu0 0
        %606 = vmatpush1.bf16.msra.mxu0 0
        %607 = vmatprep.subr.bf16.mxu0 0
        %608 = vmatpush1.bf16.msra.mxu0 0
        %609 = vmatprep.subr.bf16.mxu0 0
        %610 = vmatpush1.bf16.msra.mxu0 0
        %611 = vmatprep.subr.bf16.mxu0 0
        %612 = vmatpush1.bf16.msra.mxu0 0
        %613 = vmatprep.mubr.bf16.mxu0 0
        %614 = vmatmul.mubr.bf16.gmra.mrb[0].mxu0 %v525
        %v615 = vpop.f32.mrb[0].mxu0
        %v616 = vadd.f32 %v531, %v615
        %v617 = vpop.f32.mrb[0].mxu0
        %v618 = vpop.f32.mrb[0].mxu0
        %v619 = vadd.f32 %v531, %v618
        %v620 = vpop.f32.mrb[0].mxu0
        %621 = vmatprep.mubr.bf16.mxu0 0
        %622 = vmatmul.mubr.bf16.gmra.mrb[0].mxu0 %v526
        %v623 = vpop.f32.mrb[0].mxu0
        %v624 = vadd.f32 %v531, %v623
        %v625 = vpop.f32.mrb[0].mxu0
        %v626 = vpop.f32.mrb[0].mxu0
        %v627 = vadd.f32 %v531, %v626
        %v628 = vpop.f32.mrb[0].mxu0
        %629 = vdwg.mxu0
        %v630 = vadd.f32 %v616, %v500
        %v631 = vadd.f32 %v619, %v501
        %v632 = vadd.f32 %v624, %v502
        %v633 = vadd.f32 %v627, %v503
        %v634 = vmax.f32 %v630, 0.0
        %v635 = vmax.f32 %v631, 0.0
        %v636 = vmax.f32 %v632, 0.0
        %v637 = vmax.f32 %v633, 0.0
        %638 = vst [vmem:[#allocation2] sm:$0xff] %v634
        %639 = vst [vmem:[#allocation2 + $0x8] sm:$0xff] %v635
        %640 = vst [vmem:[#allocation2 + $0x10] sm:$0xff] %v636
        %641 = vst [vmem:[#allocation2 + $0x18] sm:$0xff] %v637
        %p642 = scmp.eq.s32.totalorder %s28, 1
        // Predicated region
        $region69: #{tpu_custom_call.1} parent=47 // pred_check
          %p643 = pneg %p642
        $region70: #{tpu_custom_call.1} parent=47 // pred_check_branch
          %645 = sbr.rel (%p643) target = $region72
        $region71: #{tpu_custom_call.1} parent=47 // pred_region
          %v646 = vld [vmem:[#allocation2] sm:$0xff]
          %v647 = vld [vmem:[#allocation2 + $0x8] sm:$0xff]
          %v648 = vld [vmem:[#allocation2 + $0x10] sm:$0xff]
          %v649 = vld [vmem:[#allocation2 + $0x18] sm:$0xff]
          %v650 = vpack.c.bf16 %v647, %v646
          %v651 = vpack.c.bf16 %v649, %v648
          %v652 = vld [vmem:[#allocation8] sm:$0xf]
          %v653 = vld [vmem:[#allocation8 + $0x4] sm:$0xf]
          %v654 = vld [vmem:[#allocation8 + $0x8] sm:$0xf]
          %v655 = vld [vmem:[#allocation8 + $0xc] sm:$0xf]
          %v656 = vld [vmem:[#allocation8 + $0x10] sm:$0xf]
          %v657 = vld [vmem:[#allocation8 + $0x14] sm:$0xf]
          %v658 = vld [vmem:[#allocation8 + $0x18] sm:$0xf]
          %v659 = vld [vmem:[#allocation8 + $0x1c] sm:$0xf]
          %v660 = vld [vmem:[#allocation8 + $0x20] sm:$0xf]
          %v661 = vld [vmem:[#allocation8 + $0x24] sm:$0xf]
          %v662 = vld [vmem:[#allocation8 + $0x28] sm:$0xf]
          %v663 = vld [vmem:[#allocation8 + $0x2c] sm:$0xf]
          %v664 = vld [vmem:[#allocation8 + $0x30] sm:$0xf]
          %v665 = vld [vmem:[#allocation8 + $0x34] sm:$0xf]
          %v666 = vld [vmem:[#allocation8 + $0x38] sm:$0xf]
          %v667 = vld [vmem:[#allocation8 + $0x3c] sm:$0xf]
          %v668 = vld [vmem:[%s6] sm:$0x1]
          %v670 = vlaneseq
          %v671 = vshrl.u32 %v670, 7
          %v672 = vsub.s32 0, %v671
          %v673 = vrot.slane %v668, %v672
          %v691 = vunpack.c.l.b16 %v652
          %v692 = vunpack.c.l.b16 %v653
          %v693 = vunpack.c.l.b16 %v654
          %v694 = vunpack.c.l.b16 %v655
          %v695 = vunpack.c.l.b16 %v656
          %v696 = vunpack.c.l.b16 %v657
          %v697 = vunpack.c.l.b16 %v658
          %v698 = vunpack.c.l.b16 %v659
          %v699 = vunpack.c.l.b16 %v660
          %v700 = vunpack.c.l.b16 %v661
          %v701 = vunpack.c.l.b16 %v662
          %v702 = vunpack.c.l.b16 %v663
          %v703 = vunpack.c.l.b16 %v664
          %v704 = vunpack.c.l.b16 %v665
          %v705 = vunpack.c.l.b16 %v666
          %v706 = vunpack.c.l.b16 %v667
          %v707 = vpack.c.b16 %v692, %v691
          %v708 = vpack.c.b16 %v694, %v693
          %v709 = vpack.c.b16 %v696, %v695
          %v710 = vpack.c.b16 %v698, %v697
          %v711 = vpack.c.b16 %v700, %v699
          %v712 = vpack.c.b16 %v702, %v701
          %v713 = vpack.c.b16 %v704, %v703
          %v714 = vpack.c.b16 %v706, %v705
          %723 = vmatprep.subr.bf16.mxu0 0
          %724 = vmatpush1.bf16.msra.mxu0 %v707
          %725 = vmatprep.subr.bf16.mxu0 0
          %726 = vmatpush1.bf16.msra.mxu0 %v708
          %727 = vmatprep.subr.bf16.mxu0 0
          %728 = vmatpush1.bf16.msra.mxu0 %v709
          %729 = vmatprep.subr.bf16.mxu0 0
          %730 = vmatpush1.bf16.msra.mxu0 %v710
          %731 = vmatprep.subr.bf16.mxu0 0
          %732 = vmatpush1.bf16.msra.mxu0 %v711
          %733 = vmatprep.subr.bf16.mxu0 0
          %734 = vmatpush1.bf16.msra.mxu0 %v712
          %735 = vmatprep.subr.bf16.mxu0 0
          %736 = vmatpush1.bf16.msra.mxu0 %v713
          %737 = vmatprep.subr.bf16.mxu0 0
          %738 = vmatpush1.bf16.msra.mxu0 %v714
          %739 = vmatprep.subr.bf16.mxu0 0
          %740 = vmatpush1.bf16.msra.mxu0 0
          %741 = vmatprep.subr.bf16.mxu0 0
          %742 = vmatpush1.bf16.msra.mxu0 0
          %743 = vmatprep.subr.bf16.mxu0 0
          %744 = vmatpush1.bf16.msra.mxu0 0
          %745 = vmatprep.subr.bf16.mxu0 0
          %746 = vmatpush1.bf16.msra.mxu0 0
          %747 = vmatprep.subr.bf16.mxu0 0
          %748 = vmatpush1.bf16.msra.mxu0 0
          %749 = vmatprep.subr.bf16.mxu0 0
          %750 = vmatpush1.bf16.msra.mxu0 0
          %751 = vmatprep.subr.bf16.mxu0 0
          %752 = vmatpush1.bf16.msra.mxu0 0
          %753 = vmatprep.subr.bf16.mxu0 0
          %754 = vmatpush1.bf16.msra.mxu0 0
          %755 = vmatprep.mubr.bf16.mxu0 0
          %756 = vmatmul.mubr.bf16.gmra.mrb[0].mxu0 %v650
          %v757 = vpop.f32.mrb[0].mxu0
          %v758 = vadd.f32 %v673, %v757
          %v759 = vpop.f32.mrb[0].mxu0
          %v760 = vpop.f32.mrb[0].mxu0
          %v761 = vadd.f32 %v673, %v760
          %v762 = vpop.f32.mrb[0].mxu0
          %763 = vmatprep.mubr.bf16.mxu0 0
          %764 = vmatmul.mubr.bf16.gmra.mrb[0].mxu0 %v651
          %v765 = vpop.f32.mrb[0].mxu0
          %v766 = vadd.f32 %v673, %v765
          %v767 = vpop.f32.mrb[0].mxu0
          %v768 = vpop.f32.mrb[0].mxu0
          %v769 = vadd.f32 %v673, %v768
          %v770 = vpop.f32.mrb[0].mxu0
          %771 = vdwg.mxu0
          %vm772 = vcmask 130048
          %773 = vst.msk [vmem:[%s355] sm:$0xff] %vm772, %v758
          %774 = vst.msk [vmem:[%s355 + $0x8] sm:$0xff] %vm772, %v761
          %775 = vst.msk [vmem:[%s355 + $0x10] sm:$0xff] %vm772, %v766
          %776 = vst.msk [vmem:[%s355 + $0x18] sm:$0xff] %vm772, %v769
        $region72: #{tpu_custom_call.1} parent=47 // pred_fallthru
          _
        %s777 = smul.u32 4, %s27
        %p778 = scmp.lt.s32.totalorder %s777, 31
        %s779 = scalar_select %p778, %s777, 31
        %s780 = smul.addr %s779, 8
        %s781 = scalar_lea.vmem %s7, %s780
        // Predicated region
        $region73: #{tpu_custom_call.1} parent=47 // pred_check
          %p782 = pneg %p205
        $region74: #{tpu_custom_call.1} parent=47 // pred_check_branch
          %784 = sbr.rel (%p782) target = $region76
        $region75: #{tpu_custom_call.1} parent=47 // pred_region
          %s785 = smul.u32 4, %s27
        $region76: #{tpu_custom_call.1} parent=47 // pred_fallthru
          _
      $region48: #{tpu_custom_call.1} parent=5 // pred_fallthru
        _
      %p786 = scmp.le.s32.totalorder 2, %s18
      // Predicated region
      $region77: #{tpu_custom_call.1} parent=5 // pred_check
        %p787 = pneg %p786
      $region78: #{tpu_custom_call.1} parent=5 // pred_check_branch
        %789 = sbr.rel (%p787) target = $region80
      $region79: #{tpu_custom_call.1} parent=5 // pred_region
        %s790 = ssub.s32 %s18, 2
        // Predicated region
        $region81: #{tpu_custom_call.1} parent=79 // pred_check
          %p791 = pneg %p211
        $region82: #{tpu_custom_call.1} parent=79 // pred_check_branch
          %793 = sbr.rel (%p791) target = $region84
        $region83: #{tpu_custom_call.1} parent=79 // pred_region
          %s794 = smul.u32 4, %s29
          %p795 = scmp.lt.s32.totalorder %s794, 31
          %s796 = scalar_select %p795, %s794, 31
          %s797 = smul.addr %s796, 8
          %s798 = scalar_lea.vmem %s7, %s797
        $region84: #{tpu_custom_call.1} parent=79 // pred_fallthru
          _
      $region80: #{tpu_custom_call.1} parent=5 // pred_fallthru
        _
    $region6: #{tpu_custom_call.1} parent=1 // loop_footer
      %s22 = sadd.s32 1, %s18
    $region7: #{tpu_custom_call.1} parent=1 // loop_footer_branch
      %17 = sbr.rel target = $region3
    $region8: #{tpu_custom_call.1} parent=1 // loop_exit
      _
    %799 = vsyncpa [#allocation4], 1
    %s800 = scalar_lea.sflag [#allocation4], 1
    %801 = vsyncpa %s800, 1
    %802 = vsyncpa [#allocation6], 1
    %803 = vsyncpa [#allocation9], 1

</llo_original>
